<compile_context>
chip_gen: v6e
topology: v6e:2x2x1
jax: 0.10.0
libtpu: 0.0.40
codegen_flags: <defaults>
</compile_context>

<pallas_src>
import functools

import jax
import jax.numpy as jnp
from jax import lax
from jax.experimental import pallas as pl
from jax.experimental.pallas import tpu as pltpu


def _round_up(x, m):
    return ((x + m - 1) // m) * m


def _vmem_capacity_bytes():
    try:
        return int(pltpu.get_tpu_info().vmem_capacity_bytes)
    except Exception:
        return 64 * 1024 * 1024  # conservative (v7x per-core VMEM)


def _pick_time_block(seq_len, bb, hp, stream_itemsize, max_tb=32):
    """Largest time block whose double-buffered x_proj slab + residents fit VMEM."""
    cap = _vmem_capacity_bytes()
    budget = (cap * 6) // 10                      # headroom for compiler scratch
    # Grid-resident bytes (upper bound: everything double-buffered).
    resident = 2 * (hp * 4 * hp * stream_itemsize     # W_hh^T (stream dtype)
                    + 4 * bb * hp * 4)                # h0, c0, h_n, c_n (f32)
    best = 1
    for tb in range(1, min(max_tb, seq_len) + 1):
        slab = 2 * tb * bb * 4 * hp * stream_itemsize  # double-buffered stream block
        if resident + slab <= budget:
            best = tb
    needed = resident + 2 * best * bb * 4 * hp * stream_itemsize
    vmem_limit = int(min(cap, max(needed + (4 << 20), 32 << 20)))
    return best, vmem_limit


def _lstm_kernel(xp_ref, whh_ref, h0_ref, c0_ref, hn_ref, cn_ref, *,
                 hp, seq_valid, needs_mask, unroll):
    """One grid step = TB timesteps of the LSTM recurrence for one batch block.

    xp_ref : (TB, BB, 4Hp)  precomputed x_t @ W_ih^T + (b_ih + b_hh), gate
                            order [i, f, o, g], stream dtype (bf16/f32)
    whh_ref: (Hp, 4Hp)      W_hh^T (grid-invariant), stream dtype
    h0/c0  : (BB, Hp)       initial state (f32)
    hn/cn  : (BB, Hp)       grid-resident outputs, double as the h/c carry
    """
    t_blk = pl.program_id(1)
    tb = xp_ref.shape[0]

    @pl.when(t_blk == 0)
    def _():
        hn_ref[...] = h0_ref[...]
        cn_ref[...] = c0_ref[...]

    whh = whh_ref[...]  # loaded once per grid step

    def step(i, carry):
        h, c = carry
        gates = xp_ref[i].astype(jnp.float32) + jnp.dot(
            h.astype(whh.dtype), whh, preferred_element_type=jnp.float32)
        # Gate order was permuted to [i, f, o, g] in the wrapper:
        #   one wide sigmoid + one tanh instead of 4 lane-sliced EUP pushes.
        sig = jax.nn.sigmoid(gates[:, :3 * hp])
        g_g = jnp.tanh(gates[:, 3 * hp:])
        i_g = sig[:, :hp]
        f_g = sig[:, hp:2 * hp]
        o_g = sig[:, 2 * hp:]
        c_new = f_g * c + i_g * g_g
        h_new = o_g * jnp.tanh(c_new)
        if needs_mask:
            # Zero-padded trailing timesteps must not mutate state.
            valid = (t_blk * tb + i) < seq_valid
            h_new = jnp.where(valid, h_new, h)
            c_new = jnp.where(valid, c_new, c)
        return h_new, c_new

    h, c = lax.fori_loop(0, tb, step, (hn_ref[...], cn_ref[...]),
                         unroll=unroll)
    hn_ref[...] = h
    cn_ref[...] = c


def lstm_classifier_forward(x_tokens, hidden, params, *,
                            stream_dtype=jnp.bfloat16):
    """Pallas implementation of LSTMClassifier.forward (eval mode).

    x_tokens: (batch, seq) int32
    hidden:   (h0, c0) each (1, batch, hidden_dim)
    returns:  (logits (batch, output_size),
               (h_n, c_n) each (1, batch, hidden_dim))
    """
    emb_w = params["embedding"]                          # (vocab, E)
    w_ih, w_hh = params["w_ih"], params["w_hh"]          # (4H, E), (4H, H)
    b_ih, b_hh = params["b_ih"], params["b_hh"]          # (4H,), (4H,)
    w_lab, b_lab = params["w_label"], params["b_label"]  # (O, H), (O,)

    B, S = x_tokens.shape
    E = emb_w.shape[1]
    H = w_hh.shape[1]

    h0, c0 = hidden
    h0 = h0[0].astype(jnp.float32)                       # (B, H)
    c0 = c0[0].astype(jnp.float32)

    # ---- gate reorder [i,f,g,o] -> [i,f,o,g] + pad per-gate width to 128 ---
    Hp = _round_up(H, 128)
    perm = [0, 1, 3, 2]                                  # PyTorch i,f,g,o -> i,f,o,g

    def reorder_pad_rows(w):                             # (4H, X) -> (4Hp, X)
        w4 = w.reshape(4, H, -1)[jnp.array(perm)]
        w4 = jnp.pad(w4, ((0, 0), (0, Hp - H), (0, 0)))
        return w4.reshape(4 * Hp, -1)

    w_ih_p = reorder_pad_rows(w_ih)                      # (4Hp, E)
    w_hh_p = reorder_pad_rows(w_hh)                      # (4Hp, H)
    bias_p = jnp.pad((b_ih + b_hh).reshape(4, H)[jnp.array(perm)],
                     ((0, 0), (0, Hp - H))).reshape(4 * Hp)

    # W_hh^T padded on the h (row) axis too so padded h lanes contribute 0.
    whh_t = jnp.pad(w_hh_p.T, ((0, Hp - H), (0, 0))).astype(stream_dtype)  # (Hp,4Hp)

    # ---- time-parallel prologue (plain XLA) --------------------------------
    # Embedding lookup directly in (S, B, E) layout (dropout_1 = identity in
    # eval); avoids transposing the 4Hp-wide projection afterwards.
    x_emb = jnp.take(emb_w, x_tokens.T, axis=0)          # (S, B, E)
    x_proj = (jnp.dot(x_emb.reshape(S * B, E), w_ih_p.T,
                      preferred_element_type=jnp.float32) + bias_p)
    x_proj = x_proj.reshape(S, B, 4 * Hp).astype(stream_dtype)

    # ---- pad batch to full sublanes ----------------------------------------
    Bp = max(8, _round_up(B, 8))
    h0p = jnp.pad(h0, ((0, Bp - B), (0, Hp - H)))
    c0p = jnp.pad(c0, ((0, Bp - B), (0, Hp - H)))
    if Bp != B:
        x_proj = jnp.pad(x_proj, ((0, 0), (0, Bp - B), (0, 0)))

    # ---- batch blocking: both TensorCores on v7x when batch is big enough --
    n_bblk = 2 if (Bp % 32 == 0) else 1                  # BB stays a mult. of 16
    BB = Bp // n_bblk

    # ---- VMEM-budget-aware time block + padded/masked sequence -------------
    itemsize = jnp.dtype(stream_dtype).itemsize
    TB, vmem_limit = _pick_time_block(S, BB, Hp, itemsize)
    Sp = _round_up(S, TB)
    needs_mask = Sp != S
    if needs_mask:
        x_proj = jnp.pad(x_proj, ((0, Sp - S), (0, 0), (0, 0)))

    grid = (n_bblk, Sp // TB)

    kernel = functools.partial(_lstm_kernel, hp=Hp, seq_valid=S,
                               needs_mask=needs_mask, unroll=min(TB, 8))

    grid_spec = pltpu.PrefetchScalarGridSpec(
        num_scalar_prefetch=0,
        grid=grid,
        in_specs=[
            # Time/batch-sliced precomputed projection (only pipelined input).
            pl.BlockSpec((TB, BB, 4 * Hp), lambda b, t: (t, b, 0)),
            # Grid-invariant / batch-resident inputs.
            pl.BlockSpec((Hp, 4 * Hp), lambda b, t: (0, 0)),   # W_hh^T
            pl.BlockSpec((BB, Hp), lambda b, t: (b, 0)),       # h0
            pl.BlockSpec((BB, Hp), lambda b, t: (b, 0)),       # c0
        ],
        out_specs=[
            pl.BlockSpec((BB, Hp), lambda b, t: (b, 0)),       # h_n (carry)
            pl.BlockSpec((BB, Hp), lambda b, t: (b, 0)),       # c_n (carry)
        ],
    )

    h_n, c_n = pl.pallas_call(
        kernel,
        out_shape=(jax.ShapeDtypeStruct((Bp, Hp), jnp.float32),
                   jax.ShapeDtypeStruct((Bp, Hp), jnp.float32)),
        grid_spec=grid_spec,
        compiler_params=pltpu.CompilerParams(
            dimension_semantics=("parallel", "arbitrary"),
            vmem_limit_bytes=vmem_limit),
    )(x_proj, whh_t, h0p, c0p)

    h_n = h_n[:B, :H]
    c_n = c_n[:B, :H]

    # ---- epilogue (plain XLA): dropout_2 identity, label projection --------
    logits = jnp.dot(h_n, w_lab.T, preferred_element_type=jnp.float32) + b_lab

    return logits, (h_n[None, :, :], c_n[None, :, :])


def reference_forward(x_tokens, hidden, params):
    """Pure-JAX f32 reference matching PyTorch semantics."""
    emb_w = params["embedding"]
    w_ih, w_hh = params["w_ih"], params["w_hh"]
    b_ih, b_hh = params["b_ih"], params["b_hh"]
    w_lab, b_lab = params["w_label"], params["b_label"]
    H = w_hh.shape[1]

    h0, c0 = hidden
    h, c = h0[0], c0[0]
    x_emb = jnp.take(emb_w, x_tokens, axis=0)            # (B, S, E)
    xs = jnp.transpose(x_emb, (1, 0, 2))                 # (S, B, E)

    def step(carry, x_t):
        h, c = carry
        gates = x_t @ w_ih.T + b_ih + h @ w_hh.T + b_hh
        i_g = jax.nn.sigmoid(gates[:, 0 * H:1 * H])
        f_g = jax.nn.sigmoid(gates[:, 1 * H:2 * H])
        g_g = jnp.tanh(gates[:, 2 * H:3 * H])
        o_g = jax.nn.sigmoid(gates[:, 3 * H:4 * H])
        c_new = f_g * c + i_g * g_g
        h_new = o_g * jnp.tanh(c_new)
        return (h_new, c_new), None

    (h, c), _ = lax.scan(step, (h, c), xs)
    logits = h @ w_lab.T + b_lab
    return logits, (h[None], c[None])


if __name__ == "__main__":
    # Small, deterministic configuration.
    vocab_size = 50
    output_size = 4
    embedding_dim = 32
    hidden_dim = 32
    batch = 2
    seq = 8

    key = jax.random.PRNGKey(0)
    keys = jax.random.split(key, 8)
    params = {
        "embedding": 0.1 * jax.random.normal(keys[0], (vocab_size, embedding_dim), jnp.float32),
        "w_ih": 0.1 * jax.random.normal(keys[1], (4 * hidden_dim, embedding_dim), jnp.float32),
        "w_hh": 0.1 * jax.random.normal(keys[2], (4 * hidden_dim, hidden_dim), jnp.float32),
        "b_ih": 0.1 * jax.random.normal(keys[3], (4 * hidden_dim,), jnp.float32),
        "b_hh": 0.1 * jax.random.normal(keys[4], (4 * hidden_dim,), jnp.float32),
        "w_label": 0.1 * jax.random.normal(keys[5], (output_size, hidden_dim), jnp.float32),
        "b_label": 0.1 * jax.random.normal(keys[6], (output_size,), jnp.float32),
    }

    x_tokens = jax.random.randint(keys[7], (batch, seq), 0, vocab_size, dtype=jnp.int32)
    hidden0 = (jnp.zeros((1, batch, hidden_dim), jnp.float32),
               jnp.zeros((1, batch, hidden_dim), jnp.float32))

    ref_logits, (ref_h, ref_c) = reference_forward(x_tokens, hidden0, params)

    # 1) f32 streaming: tight check against the f32 reference.
    logits, (h_n, c_n) = lstm_classifier_forward(
        x_tokens, hidden0, params, stream_dtype=jnp.float32)
    jax.block_until_ready((logits, h_n, c_n))
    assert jnp.allclose(logits, ref_logits, rtol=1e-4, atol=1e-5), "f32 logits mismatch"
    assert jnp.allclose(h_n, ref_h, rtol=1e-4, atol=1e-5), "f32 h_n mismatch"
    assert jnp.allclose(c_n, ref_c, rtol=1e-4, atol=1e-5), "f32 c_n mismatch"

    # 2) bf16 streaming (production path): relaxed tolerance vs f32 reference.
    logits_bf, (h_bf, c_bf) = lstm_classifier_forward(
        x_tokens, hidden0, params, stream_dtype=jnp.bfloat16)
    jax.block_until_ready((logits_bf, h_bf, c_bf))
    assert jnp.allclose(logits_bf, ref_logits, rtol=5e-2, atol=5e-3), "bf16 logits mismatch"
    assert jnp.allclose(h_bf, ref_h, rtol=5e-2, atol=5e-3), "bf16 h_n mismatch"
    assert jnp.allclose(c_bf, ref_c, rtol=5e-2, atol=5e-3), "bf16 c_n mismatch"

    print("KERNEL_OK")
</pallas_src>

<mosaic_0001>
module attributes {stable_mosaic.version = 11 : i64} {
  func.func @_lstm_kernel(%arg0: i32, %arg1: i32, %arg2: memref<8x8x512xf32, #tpu.memory_space<vmem>>, %arg3: memref<128x512xf32, #tpu.memory_space<vmem>>, %arg4: memref<8x128xf32, #tpu.memory_space<vmem>>, %arg5: memref<8x128xf32, #tpu.memory_space<vmem>>, %arg6: memref<8x128xf32, #tpu.memory_space<vmem>>, %arg7: memref<8x128xf32, #tpu.memory_space<vmem>>) attributes {dimension_semantics = [#tpu.dimension_semantics<parallel>, #tpu.dimension_semantics<arbitrary>], iteration_bounds = array<i64: 1, 1>, scalar_prefetch = 0 : i64, scratch_operands = 0 : i64, tpu.core_type = #tpu.core_type<tc>, window_params = [{transform_indices = @transform_0, window_bounds = array<i64: 8, 8, 512>}, {pipeline_mode = #tpu.pipeline_mode<synchronous>, transform_indices = @transform_1, window_bounds = array<i64: 128, 512>}, {transform_indices = @transform_2, window_bounds = array<i64: 8, 128>}, {transform_indices = @transform_3, window_bounds = array<i64: 8, 128>}, {transform_indices = @transform_4, window_bounds = array<i64: 8, 128>}, {transform_indices = @transform_5, window_bounds = array<i64: 8, 128>}]} {
    %c0_i32 = arith.constant 0 : i32
    %0 = arith.cmpi eq, %arg1, %c0_i32 : i32
    %1 = arith.extui %0 : i1 to i32
    %c0_i32_0 = arith.constant 0 : i32
    %2 = arith.cmpi ne, %1, %c0_i32_0 : i32
    scf.if %2 {
      %c0_42 = arith.constant 0 : index
      %c0_43 = arith.constant 0 : index
      %176 = vector.load %arg4[%c0_42, %c0_43] : memref<8x128xf32, #tpu.memory_space<vmem>>, vector<8x128xf32>
      %c0_44 = arith.constant 0 : index
      %c0_45 = arith.constant 0 : index
      %177 = vector.load %arg6[%c0_44, %c0_45] : memref<8x128xf32, #tpu.memory_space<vmem>>, vector<8x128xf32>
      tpu.vector_store %arg6[%c0_44, %c0_45], %176 {strides = array<i32>} : memref<8x128xf32, #tpu.memory_space<vmem>>, vector<8x128xf32>,
      %c0_46 = arith.constant 0 : index
      %c0_47 = arith.constant 0 : index
      %178 = vector.load %arg5[%c0_46, %c0_47] : memref<8x128xf32, #tpu.memory_space<vmem>>, vector<8x128xf32>
      %c0_48 = arith.constant 0 : index
      %c0_49 = arith.constant 0 : index
      %179 = vector.load %arg7[%c0_48, %c0_49] : memref<8x128xf32, #tpu.memory_space<vmem>>, vector<8x128xf32>
      tpu.vector_store %arg7[%c0_48, %c0_49], %178 {strides = array<i32>} : memref<8x128xf32, #tpu.memory_space<vmem>>, vector<8x128xf32>,
    } else {
    }
    %c0 = arith.constant 0 : index
    %c0_1 = arith.constant 0 : index
    %3 = vector.load %arg3[%c0, %c0_1] : memref<128x512xf32, #tpu.memory_space<vmem>>, vector<128x512xf32>
    %c0_2 = arith.constant 0 : index
    %c0_3 = arith.constant 0 : index
    %4 = vector.load %arg6[%c0_2, %c0_3] : memref<8x128xf32, #tpu.memory_space<vmem>>, vector<8x128xf32>
    %c0_4 = arith.constant 0 : index
    %c0_5 = arith.constant 0 : index
    %5 = vector.load %arg7[%c0_4, %c0_5] : memref<8x128xf32, #tpu.memory_space<vmem>>, vector<8x128xf32>
    %c0_i32_6 = arith.constant 0 : i32
    %6 = arith.index_cast %c0_i32_6 : i32 to index
    %c0_7 = arith.constant 0 : index
    %c0_8 = arith.constant 0 : index
    %7 = vector.load %arg2[%6, %c0_7, %c0_8] : memref<8x8x512xf32, #tpu.memory_space<vmem>>, vector<1x8x512xf32>
    %8 = vector.shape_cast %7 : vector<1x8x512xf32> to vector<8x512xf32>
    %cst = arith.constant dense<0.000000e+00> : vector<8x512xf32>
    %9 = tpu.matmul %4, %3, %cst {dimension_numbers = #tpu.dot_dimension_numbers<[1], [0], [0], [1], [0, 0, 1, 1], [], []>} : vector<8x128xf32>, vector<128x512xf32>, vector<8x512xf32> -> vector<8x512xf32>
    %10 = arith.addf %8, %9 : vector<8x512xf32>
    %11 = vector.extract_strided_slice %10 {offsets = [0, 0], sizes = [8, 384], strides = [1, 1]} : vector<8x512xf32> to vector<8x384xf32>
    %12 = arith.negf %11 : vector<8x384xf32>
    %13 = math.exp %12 : vector<8x384xf32>
    %cst_9 = arith.constant 1.000000e+00 : f32
    %14 = vector.broadcast %cst_9 : f32 to vector<8x384xf32>
    %15 = arith.addf %14, %13 : vector<8x384xf32>
    %16 = arith.divf %14, %15 : vector<8x384xf32>
    %17 = vector.extract_strided_slice %10 {offsets = [0, 384], sizes = [8, 128], strides = [1, 1]} : vector<8x512xf32> to vector<8x128xf32>
    %18 = math.tanh %17 : vector<8x128xf32>
    %19 = vector.extract_strided_slice %16 {offsets = [0, 0], sizes = [8, 128], strides = [1, 1]} : vector<8x384xf32> to vector<8x128xf32>
    %20 = vector.extract_strided_slice %16 {offsets = [0, 128], sizes = [8, 128], strides = [1, 1]} : vector<8x384xf32> to vector<8x128xf32>
    %21 = vector.extract_strided_slice %16 {offsets = [0, 256], sizes = [8, 128], strides = [1, 1]} : vector<8x384xf32> to vector<8x128xf32>
    %22 = arith.mulf %20, %5 : vector<8x128xf32>
    %23 = arith.mulf %19, %18 : vector<8x128xf32>
    %24 = arith.addf %22, %23 : vector<8x128xf32>
    %25 = math.tanh %24 : vector<8x128xf32>
    %26 = arith.mulf %21, %25 : vector<8x128xf32>
    %c1_i32 = arith.constant 1 : i32
    %27 = arith.index_cast %c1_i32 : i32 to index
    %c0_10 = arith.constant 0 : index
    %c0_11 = arith.constant 0 : index
    %28 = vector.load %arg2[%27, %c0_10, %c0_11] : memref<8x8x512xf32, #tpu.memory_space<vmem>>, vector<1x8x512xf32>
    %29 = vector.shape_cast %28 : vector<1x8x512xf32> to vector<8x512xf32>
    %cst_12 = arith.constant dense<0.000000e+00> : vector<8x512xf32>
    %30 = tpu.matmul %26, %3, %cst_12 {dimension_numbers = #tpu.dot_dimension_numbers<[1], [0], [0], [1], [0, 0, 1, 1], [], []>} : vector<8x128xf32>, vector<128x512xf32>, vector<8x512xf32> -> vector<8x512xf32>
    %31 = arith.addf %29, %30 : vector<8x512xf32>
    %32 = vector.extract_strided_slice %31 {offsets = [0, 0], sizes = [8, 384], strides = [1, 1]} : vector<8x512xf32> to vector<8x384xf32>
    %33 = arith.negf %32 : vector<8x384xf32>
    %34 = math.exp %33 : vector<8x384xf32>
    %cst_13 = arith.constant 1.000000e+00 : f32
    %35 = vector.broadcast %cst_13 : f32 to vector<8x384xf32>
    %36 = arith.addf %35, %34 : vector<8x384xf32>
    %37 = arith.divf %35, %36 : vector<8x384xf32>
    %38 = vector.extract_strided_slice %31 {offsets = [0, 384], sizes = [8, 128], strides = [1, 1]} : vector<8x512xf32> to vector<8x128xf32>
    %39 = math.tanh %38 : vector<8x128xf32>
    %40 = vector.extract_strided_slice %37 {offsets = [0, 0], sizes = [8, 128], strides = [1, 1]} : vector<8x384xf32> to vector<8x128xf32>
    %41 = vector.extract_strided_slice %37 {offsets = [0, 128], sizes = [8, 128], strides = [1, 1]} : vector<8x384xf32> to vector<8x128xf32>
    %42 = vector.extract_strided_slice %37 {offsets = [0, 256], sizes = [8, 128], strides = [1, 1]} : vector<8x384xf32> to vector<8x128xf32>
    %43 = arith.mulf %41, %24 : vector<8x128xf32>
    %44 = arith.mulf %40, %39 : vector<8x128xf32>
    %45 = arith.addf %43, %44 : vector<8x128xf32>
    %46 = math.tanh %45 : vector<8x128xf32>
    %47 = arith.mulf %42, %46 : vector<8x128xf32>
    %c2_i32 = arith.constant 2 : i32
    %48 = arith.index_cast %c2_i32 : i32 to index
    %c0_14 = arith.constant 0 : index
    %c0_15 = arith.constant 0 : index
    %49 = vector.load %arg2[%48, %c0_14, %c0_15] : memref<8x8x512xf32, #tpu.memory_space<vmem>>, vector<1x8x512xf32>
    %50 = vector.shape_cast %49 : vector<1x8x512xf32> to vector<8x512xf32>
    %cst_16 = arith.constant dense<0.000000e+00> : vector<8x512xf32>
    %51 = tpu.matmul %47, %3, %cst_16 {dimension_numbers = #tpu.dot_dimension_numbers<[1], [0], [0], [1], [0, 0, 1, 1], [], []>} : vector<8x128xf32>, vector<128x512xf32>, vector<8x512xf32> -> vector<8x512xf32>
    %52 = arith.addf %50, %51 : vector<8x512xf32>
    %53 = vector.extract_strided_slice %52 {offsets = [0, 0], sizes = [8, 384], strides = [1, 1]} : vector<8x512xf32> to vector<8x384xf32>
    %54 = arith.negf %53 : vector<8x384xf32>
    %55 = math.exp %54 : vector<8x384xf32>
    %cst_17 = arith.constant 1.000000e+00 : f32
    %56 = vector.broadcast %cst_17 : f32 to vector<8x384xf32>
    %57 = arith.addf %56, %55 : vector<8x384xf32>
    %58 = arith.divf %56, %57 : vector<8x384xf32>
    %59 = vector.extract_strided_slice %52 {offsets = [0, 384], sizes = [8, 128], strides = [1, 1]} : vector<8x512xf32> to vector<8x128xf32>
    %60 = math.tanh %59 : vector<8x128xf32>
    %61 = vector.extract_strided_slice %58 {offsets = [0, 0], sizes = [8, 128], strides = [1, 1]} : vector<8x384xf32> to vector<8x128xf32>
    %62 = vector.extract_strided_slice %58 {offsets = [0, 128], sizes = [8, 128], strides = [1, 1]} : vector<8x384xf32> to vector<8x128xf32>
    %63 = vector.extract_strided_slice %58 {offsets = [0, 256], sizes = [8, 128], strides = [1, 1]} : vector<8x384xf32> to vector<8x128xf32>
    %64 = arith.mulf %62, %45 : vector<8x128xf32>
    %65 = arith.mulf %61, %60 : vector<8x128xf32>
    %66 = arith.addf %64, %65 : vector<8x128xf32>
    %67 = math.tanh %66 : vector<8x128xf32>
    %68 = arith.mulf %63, %67 : vector<8x128xf32>
    %c3_i32 = arith.constant 3 : i32
    %69 = arith.index_cast %c3_i32 : i32 to index
    %c0_18 = arith.constant 0 : index
    %c0_19 = arith.constant 0 : index
    %70 = vector.load %arg2[%69, %c0_18, %c0_19] : memref<8x8x512xf32, #tpu.memory_space<vmem>>, vector<1x8x512xf32>
    %71 = vector.shape_cast %70 : vector<1x8x512xf32> to vector<8x512xf32>
    %cst_20 = arith.constant dense<0.000000e+00> : vector<8x512xf32>
    %72 = tpu.matmul %68, %3, %cst_20 {dimension_numbers = #tpu.dot_dimension_numbers<[1], [0], [0], [1], [0, 0, 1, 1], [], []>} : vector<8x128xf32>, vector<128x512xf32>, vector<8x512xf32> -> vector<8x512xf32>
    %73 = arith.addf %71, %72 : vector<8x512xf32>
    %74 = vector.extract_strided_slice %73 {offsets = [0, 0], sizes = [8, 384], strides = [1, 1]} : vector<8x512xf32> to vector<8x384xf32>
    %75 = arith.negf %74 : vector<8x384xf32>
    %76 = math.exp %75 : vector<8x384xf32>
    %cst_21 = arith.constant 1.000000e+00 : f32
    %77 = vector.broadcast %cst_21 : f32 to vector<8x384xf32>
    %78 = arith.addf %77, %76 : vector<8x384xf32>
    %79 = arith.divf %77, %78 : vector<8x384xf32>
    %80 = vector.extract_strided_slice %73 {offsets = [0, 384], sizes = [8, 128], strides = [1, 1]} : vector<8x512xf32> to vector<8x128xf32>
    %81 = math.tanh %80 : vector<8x128xf32>
    %82 = vector.extract_strided_slice %79 {offsets = [0, 0], sizes = [8, 128], strides = [1, 1]} : vector<8x384xf32> to vector<8x128xf32>
    %83 = vector.extract_strided_slice %79 {offsets = [0, 128], sizes = [8, 128], strides = [1, 1]} : vector<8x384xf32> to vector<8x128xf32>
    %84 = vector.extract_strided_slice %79 {offsets = [0, 256], sizes = [8, 128], strides = [1, 1]} : vector<8x384xf32> to vector<8x128xf32>
    %85 = arith.mulf %83, %66 : vector<8x128xf32>
    %86 = arith.mulf %82, %81 : vector<8x128xf32>
    %87 = arith.addf %85, %86 : vector<8x128xf32>
    %88 = math.tanh %87 : vector<8x128xf32>
    %89 = arith.mulf %84, %88 : vector<8x128xf32>
    %c4_i32 = arith.constant 4 : i32
    %90 = arith.index_cast %c4_i32 : i32 to index
    %c0_22 = arith.constant 0 : index
    %c0_23 = arith.constant 0 : index
    %91 = vector.load %arg2[%90, %c0_22, %c0_23] : memref<8x8x512xf32, #tpu.memory_space<vmem>>, vector<1x8x512xf32>
    %92 = vector.shape_cast %91 : vector<1x8x512xf32> to vector<8x512xf32>
    %cst_24 = arith.constant dense<0.000000e+00> : vector<8x512xf32>
    %93 = tpu.matmul %89, %3, %cst_24 {dimension_numbers = #tpu.dot_dimension_numbers<[1], [0], [0], [1], [0, 0, 1, 1], [], []>} : vector<8x128xf32>, vector<128x512xf32>, vector<8x512xf32> -> vector<8x512xf32>
    %94 = arith.addf %92, %93 : vector<8x512xf32>
    %95 = vector.extract_strided_slice %94 {offsets = [0, 0], sizes = [8, 384], strides = [1, 1]} : vector<8x512xf32> to vector<8x384xf32>
    %96 = arith.negf %95 : vector<8x384xf32>
    %97 = math.exp %96 : vector<8x384xf32>
    %cst_25 = arith.constant 1.000000e+00 : f32
    %98 = vector.broadcast %cst_25 : f32 to vector<8x384xf32>
    %99 = arith.addf %98, %97 : vector<8x384xf32>
    %100 = arith.divf %98, %99 : vector<8x384xf32>
    %101 = vector.extract_strided_slice %94 {offsets = [0, 384], sizes = [8, 128], strides = [1, 1]} : vector<8x512xf32> to vector<8x128xf32>
    %102 = math.tanh %101 : vector<8x128xf32>
    %103 = vector.extract_strided_slice %100 {offsets = [0, 0], sizes = [8, 128], strides = [1, 1]} : vector<8x384xf32> to vector<8x128xf32>
    %104 = vector.extract_strided_slice %100 {offsets = [0, 128], sizes = [8, 128], strides = [1, 1]} : vector<8x384xf32> to vector<8x128xf32>
    %105 = vector.extract_strided_slice %100 {offsets = [0, 256], sizes = [8, 128], strides = [1, 1]} : vector<8x384xf32> to vector<8x128xf32>
    %106 = arith.mulf %104, %87 : vector<8x128xf32>
    %107 = arith.mulf %103, %102 : vector<8x128xf32>
    %108 = arith.addf %106, %107 : vector<8x128xf32>
    %109 = math.tanh %108 : vector<8x128xf32>
    %110 = arith.mulf %105, %109 : vector<8x128xf32>
    %c5_i32 = arith.constant 5 : i32
    %111 = arith.index_cast %c5_i32 : i32 to index
    %c0_26 = arith.constant 0 : index
    %c0_27 = arith.constant 0 : index
    %112 = vector.load %arg2[%111, %c0_26, %c0_27] : memref<8x8x512xf32, #tpu.memory_space<vmem>>, vector<1x8x512xf32>
    %113 = vector.shape_cast %112 : vector<1x8x512xf32> to vector<8x512xf32>
    %cst_28 = arith.constant dense<0.000000e+00> : vector<8x512xf32>
    %114 = tpu.matmul %110, %3, %cst_28 {dimension_numbers = #tpu.dot_dimension_numbers<[1], [0], [0], [1], [0, 0, 1, 1], [], []>} : vector<8x128xf32>, vector<128x512xf32>, vector<8x512xf32> -> vector<8x512xf32>
    %115 = arith.addf %113, %114 : vector<8x512xf32>
    %116 = vector.extract_strided_slice %115 {offsets = [0, 0], sizes = [8, 384], strides = [1, 1]} : vector<8x512xf32> to vector<8x384xf32>
    %117 = arith.negf %116 : vector<8x384xf32>
    %118 = math.exp %117 : vector<8x384xf32>
    %cst_29 = arith.constant 1.000000e+00 : f32
    %119 = vector.broadcast %cst_29 : f32 to vector<8x384xf32>
    %120 = arith.addf %119, %118 : vector<8x384xf32>
    %121 = arith.divf %119, %120 : vector<8x384xf32>
    %122 = vector.extract_strided_slice %115 {offsets = [0, 384], sizes = [8, 128], strides = [1, 1]} : vector<8x512xf32> to vector<8x128xf32>
    %123 = math.tanh %122 : vector<8x128xf32>
    %124 = vector.extract_strided_slice %121 {offsets = [0, 0], sizes = [8, 128], strides = [1, 1]} : vector<8x384xf32> to vector<8x128xf32>
    %125 = vector.extract_strided_slice %121 {offsets = [0, 128], sizes = [8, 128], strides = [1, 1]} : vector<8x384xf32> to vector<8x128xf32>
    %126 = vector.extract_strided_slice %121 {offsets = [0, 256], sizes = [8, 128], strides = [1, 1]} : vector<8x384xf32> to vector<8x128xf32>
    %127 = arith.mulf %125, %108 : vector<8x128xf32>
    %128 = arith.mulf %124, %123 : vector<8x128xf32>
    %129 = arith.addf %127, %128 : vector<8x128xf32>
    %130 = math.tanh %129 : vector<8x128xf32>
    %131 = arith.mulf %126, %130 : vector<8x128xf32>
    %c6_i32 = arith.constant 6 : i32
    %132 = arith.index_cast %c6_i32 : i32 to index
    %c0_30 = arith.constant 0 : index
    %c0_31 = arith.constant 0 : index
    %133 = vector.load %arg2[%132, %c0_30, %c0_31] : memref<8x8x512xf32, #tpu.memory_space<vmem>>, vector<1x8x512xf32>
    %134 = vector.shape_cast %133 : vector<1x8x512xf32> to vector<8x512xf32>
    %cst_32 = arith.constant dense<0.000000e+00> : vector<8x512xf32>
    %135 = tpu.matmul %131, %3, %cst_32 {dimension_numbers = #tpu.dot_dimension_numbers<[1], [0], [0], [1], [0, 0, 1, 1], [], []>} : vector<8x128xf32>, vector<128x512xf32>, vector<8x512xf32> -> vector<8x512xf32>
    %136 = arith.addf %134, %135 : vector<8x512xf32>
    %137 = vector.extract_strided_slice %136 {offsets = [0, 0], sizes = [8, 384], strides = [1, 1]} : vector<8x512xf32> to vector<8x384xf32>
    %138 = arith.negf %137 : vector<8x384xf32>
    %139 = math.exp %138 : vector<8x384xf32>
    %cst_33 = arith.constant 1.000000e+00 : f32
    %140 = vector.broadcast %cst_33 : f32 to vector<8x384xf32>
    %141 = arith.addf %140, %139 : vector<8x384xf32>
    %142 = arith.divf %140, %141 : vector<8x384xf32>
    %143 = vector.extract_strided_slice %136 {offsets = [0, 384], sizes = [8, 128], strides = [1, 1]} : vector<8x512xf32> to vector<8x128xf32>
    %144 = math.tanh %143 : vector<8x128xf32>
    %145 = vector.extract_strided_slice %142 {offsets = [0, 0], sizes = [8, 128], strides = [1, 1]} : vector<8x384xf32> to vector<8x128xf32>
    %146 = vector.extract_strided_slice %142 {offsets = [0, 128], sizes = [8, 128], strides = [1, 1]} : vector<8x384xf32> to vector<8x128xf32>
    %147 = vector.extract_strided_slice %142 {offsets = [0, 256], sizes = [8, 128], strides = [1, 1]} : vector<8x384xf32> to vector<8x128xf32>
    %148 = arith.mulf %146, %129 : vector<8x128xf32>
    %149 = arith.mulf %145, %144 : vector<8x128xf32>
    %150 = arith.addf %148, %149 : vector<8x128xf32>
    %151 = math.tanh %150 : vector<8x128xf32>
    %152 = arith.mulf %147, %151 : vector<8x128xf32>
    %c7_i32 = arith.constant 7 : i32
    %153 = arith.index_cast %c7_i32 : i32 to index
    %c0_34 = arith.constant 0 : index
    %c0_35 = arith.constant 0 : index
    %154 = vector.load %arg2[%153, %c0_34, %c0_35] : memref<8x8x512xf32, #tpu.memory_space<vmem>>, vector<1x8x512xf32>
    %155 = vector.shape_cast %154 : vector<1x8x512xf32> to vector<8x512xf32>
    %cst_36 = arith.constant dense<0.000000e+00> : vector<8x512xf32>
    %156 = tpu.matmul %152, %3, %cst_36 {dimension_numbers = #tpu.dot_dimension_numbers<[1], [0], [0], [1], [0, 0, 1, 1], [], []>} : vector<8x128xf32>, vector<128x512xf32>, vector<8x512xf32> -> vector<8x512xf32>
    %157 = arith.addf %155, %156 : vector<8x512xf32>
    %158 = vector.extract_strided_slice %157 {offsets = [0, 0], sizes = [8, 384], strides = [1, 1]} : vector<8x512xf32> to vector<8x384xf32>
    %159 = arith.negf %158 : vector<8x384xf32>
    %160 = math.exp %159 : vector<8x384xf32>
    %cst_37 = arith.constant 1.000000e+00 : f32
    %161 = vector.broadcast %cst_37 : f32 to vector<8x384xf32>
    %162 = arith.addf %161, %160 : vector<8x384xf32>
    %163 = arith.divf %161, %162 : vector<8x384xf32>
    %164 = vector.extract_strided_slice %157 {offsets = [0, 384], sizes = [8, 128], strides = [1, 1]} : vector<8x512xf32> to vector<8x128xf32>
    %165 = math.tanh %164 : vector<8x128xf32>
    %166 = vector.extract_strided_slice %163 {offsets = [0, 0], sizes = [8, 128], strides = [1, 1]} : vector<8x384xf32> to vector<8x128xf32>
    %167 = vector.extract_strided_slice %163 {offsets = [0, 128], sizes = [8, 128], strides = [1, 1]} : vector<8x384xf32> to vector<8x128xf32>
    %168 = vector.extract_strided_slice %163 {offsets = [0, 256], sizes = [8, 128], strides = [1, 1]} : vector<8x384xf32> to vector<8x128xf32>
    %169 = arith.mulf %167, %150 : vector<8x128xf32>
    %170 = arith.mulf %166, %165 : vector<8x128xf32>
    %171 = arith.addf %169, %170 : vector<8x128xf32>
    %172 = math.tanh %171 : vector<8x128xf32>
    %173 = arith.mulf %168, %172 : vector<8x128xf32>
    %c8_i32 = arith.constant 8 : i32
    %c0_38 = arith.constant 0 : index
    %c0_39 = arith.constant 0 : index
    %174 = vector.load %arg6[%c0_38, %c0_39] : memref<8x128xf32, #tpu.memory_space<vmem>>, vector<8x128xf32>
    tpu.vector_store %arg6[%c0_38, %c0_39], %173 {strides = array<i32>} : memref<8x128xf32, #tpu.memory_space<vmem>>, vector<8x128xf32>,
    %c0_40 = arith.constant 0 : index
    %c0_41 = arith.constant 0 : index
    %175 = vector.load %arg7[%c0_40, %c0_41] : memref<8x128xf32, #tpu.memory_space<vmem>>, vector<8x128xf32>
    tpu.vector_store %arg7[%c0_40, %c0_41], %171 {strides = array<i32>} : memref<8x128xf32, #tpu.memory_space<vmem>>, vector<8x128xf32>,
    return
  }
  func.func @transform_0(%arg0: i32, %arg1: i32) -> (i32, i32, i32) {
    %c0_i32 = arith.constant 0 : i32
    %c0_i32_0 = arith.constant 0 : i32
    return %arg1, %arg0, %c0_i32 : i32, i32, i32
  }
  func.func @transform_1(%arg0: i32, %arg1: i32) -> (i32, i32) {
    %c0_i32 = arith.constant 0 : i32
    %c0_i32_0 = arith.constant 0 : i32
    %c0_i32_1 = arith.constant 0 : i32
    return %c0_i32, %c0_i32_0 : i32, i32
  }
  func.func @transform_2(%arg0: i32, %arg1: i32) -> (i32, i32) {
    %c0_i32 = arith.constant 0 : i32
    %c0_i32_0 = arith.constant 0 : i32
    return %arg0, %c0_i32 : i32, i32
  }
  func.func @transform_3(%arg0: i32, %arg1: i32) -> (i32, i32) {
    %c0_i32 = arith.constant 0 : i32
    %c0_i32_0 = arith.constant 0 : i32
    return %arg0, %c0_i32 : i32, i32
  }
  func.func @transform_4(%arg0: i32, %arg1: i32) -> (i32, i32) {
    %c0_i32 = arith.constant 0 : i32
    %c0_i32_0 = arith.constant 0 : i32
    return %arg0, %c0_i32 : i32, i32
  }
  func.func @transform_5(%arg0: i32, %arg1: i32) -> (i32, i32) {
    %c0_i32 = arith.constant 0 : i32
    %c0_i32_0 = arith.constant 0 : i32
    return %arg0, %c0_i32 : i32, i32
  }
}

</mosaic_0001>

<llo_original>
// kernel: tpu_custom_call.1
$region0: #{tpu_custom_call.1}
  #allocation0 [shape = 'u32[]', space=smem, size = 0x4, offset = 0x4, fixed_abs, tag = 'smem constant byte address 0x4 - core index']
  #allocation1 [shape = 'u32[144,128]{1,0:T(1,128)}', space=vmem, size = 0x12000, scoped, tag = 'internal scratch']
  %s0 = inlined_call_operand.hbm [shape: f32[8,8,512], index: 0, kind: input, shape index: {}]
  %s1 = inlined_call_operand.hbm [shape: f32[128,512], index: 1, kind: input, shape index: {}]
  %s2 = inlined_call_operand.hbm [shape: f32[8,128], index: 2, kind: input, shape index: {}]
  %s3 = inlined_call_operand.hbm [shape: f32[8,128], index: 3, kind: input, shape index: {}]
  %s4 = inlined_call_operand.hbm [shape: f32[8,128], index: 4, kind: output, shape index: {0}]
  %s5 = inlined_call_operand.hbm [shape: f32[8,128], index: 5, kind: output, shape index: {1}]
  %6 = xla_tuple %s4, %s5
  %s7 = sld [smem:[#allocation0]]
  $region54: #{tpu_custom_call.1} parent=0
    _
  %s9 = ssub.s32 1, %s7
  %s10 = scalar_select 0, %s9, %s7
  $region1: #{tpu_custom_call.1} parent=0
    #allocation2 [shape = 'u8[131072]{0}', space=vmem, size = 0x20000, scoped, tag = 'input window, operand 0, single buffered']
    #allocation3 [shape = 's32[1]{0}', space=sflag, size = 0x4, scoped, tag = 'scoped memory for tpu_custom_call.1']
    #allocation4 [shape = 's32[1]{0}', space=sflag, size = 0x4, scoped, tag = 'scoped memory for tpu_custom_call.1']
    #allocation5 [shape = 'u8[262144]{0}', space=vmem, size = 0x40000, scoped, tag = 'input window, operand 1, single buffered']
    #allocation6 [shape = 's32[1]{0}', space=sflag, size = 0x4, scoped, tag = 'scoped memory for tpu_custom_call.1']
    #allocation7 [shape = 'u8[4096]{0}', space=vmem, size = 0x1000, scoped, tag = 'input window, operand 2, single buffered']
    #allocation8 [shape = 'u8[4096]{0}', space=vmem, size = 0x1000, scoped, tag = 'input window, operand 3, single buffered']
    #allocation9 [shape = 's32[1]{0}', space=sflag, size = 0x4, scoped, tag = 'scoped memory for tpu_custom_call.1']
    #allocation10 [shape = 'u8[4096]{0}', space=vmem, size = 0x1000, scoped, tag = 'output window, operand 0, single buffered']
    #allocation11 [shape = 'u8[4096]{0}', space=vmem, size = 0x1000, scoped, tag = 'output window, operand 1, single buffered']
    #allocation12 [shape = 's32[1]{0}', space=sflag, size = 0x4, scoped, tag = 'scoped memory for tpu_custom_call.1']
    %11 = vsyncpa [#allocation3], 0
    %12 = vsyncpa [#allocation6], 0
    %13 = vsyncpa [#allocation9], 0
    %14 = vsyncpa [#allocation4], 0
    %15 = vsyncpa [#allocation12], 0
    // Predicated region
    $region2: #{tpu_custom_call.1} parent=1 // pred_check
      _
    $region3: #{tpu_custom_call.1} parent=1 // pred_check_branch
      %17 = sbr.rel (0) target = $region5
    $region4: #{tpu_custom_call.1} parent=1 // pred_region
      %s19 = ssub.s32 4096, 4096
      %20 = vsyncadd [#allocation3], %s19
      %s21 = sshll.u32 [#allocation2], 4
      %s22 = int_to_ptr.vmem [resolvable:$true] %s21
      %27 = dma.hbm_to_vmem [thread:$0]  %s0, 4096, %s22, [#allocation3], 512, 512, 32
    $region5: #{tpu_custom_call.1} parent=1 // pred_fallthru
      _
    // Predicated region
    $region6: #{tpu_custom_call.1} parent=1 // pred_check
      _
    $region7: #{tpu_custom_call.1} parent=1 // pred_check_branch
      %29 = sbr.rel (0) target = $region9
    $region8: #{tpu_custom_call.1} parent=1 // pred_region
      %s31 = ssub.s32 8192, 8192
      %32 = vsyncadd [#allocation6], %s31
      %s33 = sshll.u32 [#allocation5], 4
      %s34 = int_to_ptr.vmem [resolvable:$true] %s33
      %39 = dma.hbm_to_vmem [thread:$0]  %s1, 8192, %s34, [#allocation6], 512, 512, 32
    $region9: #{tpu_custom_call.1} parent=1 // pred_fallthru
      _
    // Predicated region
    $region10: #{tpu_custom_call.1} parent=1 // pred_check
      _
    $region11: #{tpu_custom_call.1} parent=1 // pred_check_branch
      %41 = sbr.rel (0) target = $region13
    $region12: #{tpu_custom_call.1} parent=1 // pred_region
      %s43 = ssub.s32 128, 128
      %44 = vsyncadd [#allocation6], %s43
      %s46 = sshll.u32 [#allocation7], 4
      %s47 = int_to_ptr.vmem [resolvable:$true] %s46
      %49 = dma.hbm_to_vmem [thread:$0]  %s2, 128, %s47, [#allocation6]
    $region13: #{tpu_custom_call.1} parent=1 // pred_fallthru
      _
    // Predicated region
    $region14: #{tpu_custom_call.1} parent=1 // pred_check
      _
    $region15: #{tpu_custom_call.1} parent=1 // pred_check_branch
      %51 = sbr.rel (0) target = $region17
    $region16: #{tpu_custom_call.1} parent=1 // pred_region
      %s53 = ssub.s32 128, 128
      %54 = vsyncadd [#allocation9], %s53
      %s56 = sshll.u32 [#allocation8], 4
      %s57 = int_to_ptr.vmem [resolvable:$true] %s56
      %59 = dma.hbm_to_vmem [thread:$0]  %s3, 128, %s57, [#allocation9]
    $region17: #{tpu_custom_call.1} parent=1 // pred_fallthru
      _
    // Predicated region
    $region18: #{tpu_custom_call.1} parent=1 // pred_check
      _
    $region19: #{tpu_custom_call.1} parent=1 // pred_check_branch
      %61 = sbr.rel (0) target = $region21
    $region20: #{tpu_custom_call.1} parent=1 // pred_region
      %62 = dma.done [#allocation3], 4096
    $region21: #{tpu_custom_call.1} parent=1 // pred_fallthru
      _
    // Predicated region
    $region22: #{tpu_custom_call.1} parent=1 // pred_check
      _
    $region23: #{tpu_custom_call.1} parent=1 // pred_check_branch
      %64 = sbr.rel (0) target = $region25
    $region24: #{tpu_custom_call.1} parent=1 // pred_region
      %65 = dma.done [#allocation6], 8192
    $region25: #{tpu_custom_call.1} parent=1 // pred_fallthru
      _
    // Predicated region
    $region26: #{tpu_custom_call.1} parent=1 // pred_check
      _
    $region27: #{tpu_custom_call.1} parent=1 // pred_check_branch
      %67 = sbr.rel (0) target = $region29
    $region28: #{tpu_custom_call.1} parent=1 // pred_region
      %68 = dma.done [#allocation6], 128
    $region29: #{tpu_custom_call.1} parent=1 // pred_fallthru
      _
    // Predicated region
    $region30: #{tpu_custom_call.1} parent=1 // pred_check
      _
    $region31: #{tpu_custom_call.1} parent=1 // pred_check_branch
      %70 = sbr.rel (0) target = $region33
    $region32: #{tpu_custom_call.1} parent=1 // pred_region
      %71 = dma.done [#allocation9], 128
    $region33: #{tpu_custom_call.1} parent=1 // pred_fallthru
      _
    %p72 = scmp.eq.s32.totalorder 0, 0
    // Predicated region
    $region34: #{tpu_custom_call.1} parent=1 // pred_check
      %p73 = pneg %p72
    $region35: #{tpu_custom_call.1} parent=1 // pred_check_branch
      %75 = sbr.rel (%p73) target = $region37
    $region36: #{tpu_custom_call.1} parent=1 // pred_region
      %v76 = vld [vmem:[#allocation7] sm:$0xff]
      %77 = vst [vmem:[#allocation10] sm:$0xff] %v76
      %v78 = vld [vmem:[#allocation8] sm:$0xff]
      %79 = vst [vmem:[#allocation11] sm:$0xff] %v78
    $region37: #{tpu_custom_call.1} parent=1 // pred_fallthru
      _
    %v80 = vld [vmem:[#allocation5] sm:$0xff]
    %v81 = vld [vmem:[#allocation5 + $0x8] sm:$0xff]
    %v82 = vld [vmem:[#allocation5 + $0x10] sm:$0xff]
    %v83 = vld [vmem:[#allocation5 + $0x18] sm:$0xff]
    %v84 = vld [vmem:[#allocation5 + $0x20] sm:$0xff]
    %v85 = vld [vmem:[#allocation5 + $0x28] sm:$0xff]
    %v86 = vld [vmem:[#allocation5 + $0x30] sm:$0xff]
    %v87 = vld [vmem:[#allocation5 + $0x38] sm:$0xff]
    %v88 = vld [vmem:[#allocation5 + $0x40] sm:$0xff]
    %v89 = vld [vmem:[#allocation5 + $0x48] sm:$0xff]
    %v90 = vld [vmem:[#allocation5 + $0x50] sm:$0xff]
    %v91 = vld [vmem:[#allocation5 + $0x58] sm:$0xff]
    %v92 = vld [vmem:[#allocation5 + $0x60] sm:$0xff]
    %v93 = vld [vmem:[#allocation5 + $0x68] sm:$0xff]
    %v94 = vld [vmem:[#allocation5 + $0x70] sm:$0xff]
    %v95 = vld [vmem:[#allocation5 + $0x78] sm:$0xff]
    %v96 = vld [vmem:[#allocation5 + $0x80] sm:$0xff]
    %v97 = vld [vmem:[#allocation5 + $0x88] sm:$0xff]
    %v98 = vld [vmem:[#allocation5 + $0x90] sm:$0xff]
    %v99 = vld [vmem:[#allocation5 + $0x98] sm:$0xff]
    %v100 = vld [vmem:[#allocation5 + $0xa0] sm:$0xff]
    %v101 = vld [vmem:[#allocation5 + $0xa8] sm:$0xff]
    %v102 = vld [vmem:[#allocation5 + $0xb0] sm:$0xff]
    %v103 = vld [vmem:[#allocation5 + $0xb8] sm:$0xff]
    %v104 = vld [vmem:[#allocation5 + $0xc0] sm:$0xff]
    %v105 = vld [vmem:[#allocation5 + $0xc8] sm:$0xff]
    %v106 = vld [vmem:[#allocation5 + $0xd0] sm:$0xff]
    %v107 = vld [vmem:[#allocation5 + $0xd8] sm:$0xff]
    %v108 = vld [vmem:[#allocation5 + $0xe0] sm:$0xff]
    %v109 = vld [vmem:[#allocation5 + $0xe8] sm:$0xff]
    %v110 = vld [vmem:[#allocation5 + $0xf0] sm:$0xff]
    %v111 = vld [vmem:[#allocation5 + $0xf8] sm:$0xff]
    %v112 = vld [vmem:[#allocation5 + $0x100] sm:$0xff]
    %v113 = vld [vmem:[#allocation5 + $0x108] sm:$0xff]
    %v114 = vld [vmem:[#allocation5 + $0x110] sm:$0xff]
    %v115 = vld [vmem:[#allocation5 + $0x118] sm:$0xff]
    %v116 = vld [vmem:[#allocation5 + $0x120] sm:$0xff]
    %v117 = vld [vmem:[#allocation5 + $0x128] sm:$0xff]
    %v118 = vld [vmem:[#allocation5 + $0x130] sm:$0xff]
    %v119 = vld [vmem:[#allocation5 + $0x138] sm:$0xff]
    %v120 = vld [vmem:[#allocation5 + $0x140] sm:$0xff]
    %v121 = vld [vmem:[#allocation5 + $0x148] sm:$0xff]
    %v122 = vld [vmem:[#allocation5 + $0x150] sm:$0xff]
    %v123 = vld [vmem:[#allocation5 + $0x158] sm:$0xff]
    %v124 = vld [vmem:[#allocation5 + $0x160] sm:$0xff]
    %v125 = vld [vmem:[#allocation5 + $0x168] sm:$0xff]
    %v126 = vld [vmem:[#allocation5 + $0x170] sm:$0xff]
    %v127 = vld [vmem:[#allocation5 + $0x178] sm:$0xff]
    %v128 = vld [vmem:[#allocation5 + $0x180] sm:$0xff]
    %v129 = vld [vmem:[#allocation5 + $0x188] sm:$0xff]
    %v130 = vld [vmem:[#allocation5 + $0x190] sm:$0xff]
    %v131 = vld [vmem:[#allocation5 + $0x198] sm:$0xff]
    %v132 = vld [vmem:[#allocation5 + $0x1a0] sm:$0xff]
    %v133 = vld [vmem:[#allocation5 + $0x1a8] sm:$0xff]
    %v134 = vld [vmem:[#allocation5 + $0x1b0] sm:$0xff]
    %v135 = vld [vmem:[#allocation5 + $0x1b8] sm:$0xff]
    %v136 = vld [vmem:[#allocation5 + $0x1c0] sm:$0xff]
    %v137 = vld [vmem:[#allocation5 + $0x1c8] sm:$0xff]
    %v138 = vld [vmem:[#allocation5 + $0x1d0] sm:$0xff]
    %v139 = vld [vmem:[#allocation5 + $0x1d8] sm:$0xff]
    %v140 = vld [vmem:[#allocation5 + $0x1e0] sm:$0xff]
    %v141 = vld [vmem:[#allocation5 + $0x1e8] sm:$0xff]
    %v142 = vld [vmem:[#allocation5 + $0x1f0] sm:$0xff]
    %v143 = vld [vmem:[#allocation5 + $0x1f8] sm:$0xff]
    %v144 = vld [vmem:[#allocation10] sm:$0xff]
    %v145 = vld [vmem:[#allocation11] sm:$0xff]
    %v146 = vld [vmem:[#allocation2] sm:$0xff]
    %v147 = vld [vmem:[#allocation2 + $0x8] sm:$0xff]
    %v148 = vld [vmem:[#allocation2 + $0x10] sm:$0xff]
    %v149 = vld [vmem:[#allocation2 + $0x18] sm:$0xff]
    %150 = vmatprep.subr.mxu0 %v141
    %151 = vmatpush1.msra.mxu0 %v140
    %152 = vmatprep.subr.mxu0 %v137
    %153 = vmatpush1.msra.mxu0 %v136
    %154 = vmatprep.subr.mxu0 %v133
    %155 = vmatpush1.msra.mxu0 %v132
    %156 = vmatprep.subr.mxu0 %v129
    %157 = vmatpush1.msra.mxu0 %v128
    %158 = vmatprep.subr.mxu0 %v125
    %159 = vmatpush1.msra.mxu0 %v124
    %160 = vmatprep.subr.mxu0 %v121
    %161 = vmatpush1.msra.mxu0 %v120
    %162 = vmatprep.subr.mxu0 %v117
    %163 = vmatpush1.msra.mxu0 %v116
    %164 = vmatprep.subr.mxu0 %v113
    %165 = vmatpush1.msra.mxu0 %v112
    %166 = vmatprep.subr.mxu0 %v109
    %167 = vmatpush1.msra.mxu0 %v108
    %168 = vmatprep.subr.mxu0 %v105
    %169 = vmatpush1.msra.mxu0 %v104
    %170 = vmatprep.subr.mxu0 %v101
    %171 = vmatpush1.msra.mxu0 %v100
    %172 = vmatprep.subr.mxu0 %v97
    %173 = vmatpush1.msra.mxu0 %v96
    %174 = vmatprep.subr.mxu0 %v93
    %175 = vmatpush1.msra.mxu0 %v92
    %176 = vmatprep.subr.mxu0 %v89
    %177 = vmatpush1.msra.mxu0 %v88
    %178 = vmatprep.subr.mxu0 %v85
    %179 = vmatpush1.msra.mxu0 %v84
    %180 = vmatprep.subr.mxu0 %v81
    %181 = vmatpush1.msra.mxu0 %v80
    %182 = vmatprep.subr.mxu0 0.0
    %183 = vmatpush2.msra.mxu0 0.0
    %184 = vmatprep.subr.mxu0 0.0
    %185 = vmatpush2.msra.mxu0 0.0
    %186 = vmatprep.subr.mxu0 0.0
    %187 = vmatpush2.msra.mxu0 0.0
    %188 = vmatprep.subr.mxu0 0.0
    %189 = vmatpush2.msra.mxu0 0.0
    %190 = vmatprep.subr.mxu0 0.0
    %191 = vmatpush2.msra.mxu0 0.0
    %192 = vmatprep.subr.mxu0 0.0
    %193 = vmatpush2.msra.mxu0 0.0
    %194 = vmatprep.subr.mxu0 0.0
    %195 = vmatpush2.msra.mxu0 0.0
    %196 = vmatprep.subr.mxu0 0.0
    %197 = vmatpush2.msra.mxu0 0.0
    %198 = vmatprep.subr.mxu0 0.0
    %199 = vmatpush2.msra.mxu0 0.0
    %200 = vmatprep.subr.mxu0 0.0
    %201 = vmatpush2.msra.mxu0 0.0
    %202 = vmatprep.subr.mxu0 0.0
    %203 = vmatpush2.msra.mxu0 0.0
    %204 = vmatprep.subr.mxu0 0.0
    %205 = vmatpush2.msra.mxu0 0.0
    %206 = vmatprep.subr.mxu0 0.0
    %207 = vmatpush2.msra.mxu0 0.0
    %208 = vmatprep.subr.mxu0 0.0
    %209 = vmatpush2.msra.mxu0 0.0
    %210 = vmatprep.subr.mxu0 0.0
    %211 = vmatpush2.msra.mxu0 0.0
    %212 = vmatprep.subr.mxu0 0.0
    %213 = vmatpush2.msra.mxu0 0.0
    %214 = vmatprep.mubr.f32.mxu0 0.0
    %215 = vmatmul.mubr.f32.gmra.mxu0 %v144
    %v216 = vpop.f32.mrf.mxu0
    %v217 = vadd.f32 0.0, %v216
    %v218 = vpop.f32.mrf.mxu0
    %v219 = vadd.f32 0.0, %v218
    %220 = vdwg.mxu0
    %221 = vmatprep.subr.mxu0 %v143
    %222 = vmatpush1.msra.mxu0 %v142
    %223 = vmatprep.subr.mxu0 %v139
    %224 = vmatpush1.msra.mxu0 %v138
    %225 = vmatprep.subr.mxu0 %v135
    %226 = vmatpush1.msra.mxu0 %v134
    %227 = vmatprep.subr.mxu0 %v131
    %228 = vmatpush1.msra.mxu0 %v130
    %229 = vmatprep.subr.mxu0 %v127
    %230 = vmatpush1.msra.mxu0 %v126
    %231 = vmatprep.subr.mxu0 %v123
    %232 = vmatpush1.msra.mxu0 %v122
    %233 = vmatprep.subr.mxu0 %v119
    %234 = vmatpush1.msra.mxu0 %v118
    %235 = vmatprep.subr.mxu0 %v115
    %236 = vmatpush1.msra.mxu0 %v114
    %237 = vmatprep.subr.mxu0 %v111
    %238 = vmatpush1.msra.mxu0 %v110
    %239 = vmatprep.subr.mxu0 %v107
    %240 = vmatpush1.msra.mxu0 %v106
    %241 = vmatprep.subr.mxu0 %v103
    %242 = vmatpush1.msra.mxu0 %v102
    %243 = vmatprep.subr.mxu0 %v99
    %244 = vmatpush1.msra.mxu0 %v98
    %245 = vmatprep.subr.mxu0 %v95
    %246 = vmatpush1.msra.mxu0 %v94
    %247 = vmatprep.subr.mxu0 %v91
    %248 = vmatpush1.msra.mxu0 %v90
    %249 = vmatprep.subr.mxu0 %v87
    %250 = vmatpush1.msra.mxu0 %v86
    %251 = vmatprep.subr.mxu0 %v83
    %252 = vmatpush1.msra.mxu0 %v82
    %253 = vmatprep.subr.mxu0 0.0
    %254 = vmatpush2.msra.mxu0 0.0
    %255 = vmatprep.subr.mxu0 0.0
    %256 = vmatpush2.msra.mxu0 0.0
    %257 = vmatprep.subr.mxu0 0.0
    %258 = vmatpush2.msra.mxu0 0.0
    %259 = vmatprep.subr.mxu0 0.0
    %260 = vmatpush2.msra.mxu0 0.0
    %261 = vmatprep.subr.mxu0 0.0
    %262 = vmatpush2.msra.mxu0 0.0
    %263 = vmatprep.subr.mxu0 0.0
    %264 = vmatpush2.msra.mxu0 0.0
    %265 = vmatprep.subr.mxu0 0.0
    %266 = vmatpush2.msra.mxu0 0.0
    %267 = vmatprep.subr.mxu0 0.0
    %268 = vmatpush2.msra.mxu0 0.0
    %269 = vmatprep.subr.mxu0 0.0
    %270 = vmatpush2.msra.mxu0 0.0
    %271 = vmatprep.subr.mxu0 0.0
    %272 = vmatpush2.msra.mxu0 0.0
    %273 = vmatprep.subr.mxu0 0.0
    %274 = vmatpush2.msra.mxu0 0.0
    %275 = vmatprep.subr.mxu0 0.0
    %276 = vmatpush2.msra.mxu0 0.0
    %277 = vmatprep.subr.mxu0 0.0
    %278 = vmatpush2.msra.mxu0 0.0
    %279 = vmatprep.subr.mxu0 0.0
    %280 = vmatpush2.msra.mxu0 0.0
    %281 = vmatprep.subr.mxu0 0.0
    %282 = vmatpush2.msra.mxu0 0.0
    %283 = vmatprep.subr.mxu0 0.0
    %284 = vmatpush2.msra.mxu0 0.0
    %285 = vmatprep.mubr.f32.mxu0 0.0
    %286 = vmatmul.mubr.f32.gmra.mxu0 %v144
    %v287 = vpop.f32.mrf.mxu0
    %v288 = vadd.f32 0.0, %v287
    %v289 = vpop.f32.mrf.mxu0
    %v290 = vadd.f32 0.0, %v289
    %291 = vdwg.mxu0
    %v292 = vadd.f32 %v146, %v217
    %v293 = vadd.f32 %v147, %v219
    %v294 = vadd.f32 %v148, %v288
    %v295 = vadd.f32 %v149, %v290
    %v296 = vxor.u32 %v292, 2147483648
    %v297 = vxor.u32 %v293, 2147483648
    %v298 = vxor.u32 %v294, 2147483648
    %v299 = vmul.f32 %v296, 1.442695
    %v300 = vpow.pop %v299
    %v301 = vmul.f32 %v297, 1.442695
    %v302 = vpow.pop %v301
    %v303 = vmul.f32 %v298, 1.442695
    %v304 = vpow.pop %v303
    %v305 = vadd.f32 %v300, 1.0
    %v306 = vadd.f32 %v302, 1.0
    %v307 = vadd.f32 %v304, 1.0
    %v308 = vrcp.pop %v305
    %v309 = vmul.f32 1.0, %v308
    %v310 = vrcp.pop %v306
    %v311 = vmul.f32 1.0, %v310
    %v312 = vrcp.pop %v307
    %v313 = vmul.f32 1.0, %v312
    %v314 = vtanh.pop %v295
    %v315 = vmul.f32 %v311, %v145
    %v316 = vmul.f32 %v309, %v314
    %v317 = vadd.f32 %v315, %v316
    %v318 = vtanh.pop %v317
    %v319 = vmul.f32 %v313, %v318
    %s320 = scalar_lea.vmem [#allocation2], 32
    %v321 = vld [vmem:[%s320] sm:$0xff]
    %v322 = vld [vmem:[%s320 + $0x8] sm:$0xff]
    %v323 = vld [vmem:[%s320 + $0x10] sm:$0xff]
    %v324 = vld [vmem:[%s320 + $0x18] sm:$0xff]
    %325 = vmatprep.subr.mxu0 %v141
    %326 = vmatpush1.msra.mxu0 %v140
    %327 = vmatprep.subr.mxu0 %v137
    %328 = vmatpush1.msra.mxu0 %v136
    %329 = vmatprep.subr.mxu0 %v133
    %330 = vmatpush1.msra.mxu0 %v132
    %331 = vmatprep.subr.mxu0 %v129
    %332 = vmatpush1.msra.mxu0 %v128
    %333 = vmatprep.subr.mxu0 %v125
    %334 = vmatpush1.msra.mxu0 %v124
    %335 = vmatprep.subr.mxu0 %v121
    %336 = vmatpush1.msra.mxu0 %v120
    %337 = vmatprep.subr.mxu0 %v117
    %338 = vmatpush1.msra.mxu0 %v116
    %339 = vmatprep.subr.mxu0 %v113
    %340 = vmatpush1.msra.mxu0 %v112
    %341 = vmatprep.subr.mxu0 %v109
    %342 = vmatpush1.msra.mxu0 %v108
    %343 = vmatprep.subr.mxu0 %v105
    %344 = vmatpush1.msra.mxu0 %v104
    %345 = vmatprep.subr.mxu0 %v101
    %346 = vmatpush1.msra.mxu0 %v100
    %347 = vmatprep.subr.mxu0 %v97
    %348 = vmatpush1.msra.mxu0 %v96
    %349 = vmatprep.subr.mxu0 %v93
    %350 = vmatpush1.msra.mxu0 %v92
    %351 = vmatprep.subr.mxu0 %v89
    %352 = vmatpush1.msra.mxu0 %v88
    %353 = vmatprep.subr.mxu0 %v85
    %354 = vmatpush1.msra.mxu0 %v84
    %355 = vmatprep.subr.mxu0 %v81
    %356 = vmatpush1.msra.mxu0 %v80
    %357 = vmatprep.subr.mxu0 0.0
    %358 = vmatpush2.msra.mxu0 0.0
    %359 = vmatprep.subr.mxu0 0.0
    %360 = vmatpush2.msra.mxu0 0.0
    %361 = vmatprep.subr.mxu0 0.0
    %362 = vmatpush2.msra.mxu0 0.0
    %363 = vmatprep.subr.mxu0 0.0
    %364 = vmatpush2.msra.mxu0 0.0
    %365 = vmatprep.subr.mxu0 0.0
    %366 = vmatpush2.msra.mxu0 0.0
    %367 = vmatprep.subr.mxu0 0.0
    %368 = vmatpush2.msra.mxu0 0.0
    %369 = vmatprep.subr.mxu0 0.0
    %370 = vmatpush2.msra.mxu0 0.0
    %371 = vmatprep.subr.mxu0 0.0
    %372 = vmatpush2.msra.mxu0 0.0
    %373 = vmatprep.subr.mxu0 0.0
    %374 = vmatpush2.msra.mxu0 0.0
    %375 = vmatprep.subr.mxu0 0.0
    %376 = vmatpush2.msra.mxu0 0.0
    %377 = vmatprep.subr.mxu0 0.0
    %378 = vmatpush2.msra.mxu0 0.0
    %379 = vmatprep.subr.mxu0 0.0
    %380 = vmatpush2.msra.mxu0 0.0
    %381 = vmatprep.subr.mxu0 0.0
    %382 = vmatpush2.msra.mxu0 0.0
    %383 = vmatprep.subr.mxu0 0.0
    %384 = vmatpush2.msra.mxu0 0.0
    %385 = vmatprep.subr.mxu0 0.0
    %386 = vmatpush2.msra.mxu0 0.0
    %387 = vmatprep.subr.mxu0 0.0
    %388 = vmatpush2.msra.mxu0 0.0
    %389 = vmatprep.mubr.f32.mxu0 0.0
    %390 = vmatmul.mubr.f32.gmra.mxu0 %v319
    %v391 = vpop.f32.mrf.mxu0
    %v392 = vadd.f32 0.0, %v391
    %v393 = vpop.f32.mrf.mxu0
    %v394 = vadd.f32 0.0, %v393
    %395 = vdwg.mxu0
    %396 = vmatprep.subr.mxu0 %v143
    %397 = vmatpush1.msra.mxu0 %v142
    %398 = vmatprep.subr.mxu0 %v139
    %399 = vmatpush1.msra.mxu0 %v138
    %400 = vmatprep.subr.mxu0 %v135
    %401 = vmatpush1.msra.mxu0 %v134
    %402 = vmatprep.subr.mxu0 %v131
    %403 = vmatpush1.msra.mxu0 %v130
    %404 = vmatprep.subr.mxu0 %v127
    %405 = vmatpush1.msra.mxu0 %v126
    %406 = vmatprep.subr.mxu0 %v123
    %407 = vmatpush1.msra.mxu0 %v122
    %408 = vmatprep.subr.mxu0 %v119
    %409 = vmatpush1.msra.mxu0 %v118
    %410 = vmatprep.subr.mxu0 %v115
    %411 = vmatpush1.msra.mxu0 %v114
    %412 = vmatprep.subr.mxu0 %v111
    %413 = vmatpush1.msra.mxu0 %v110
    %414 = vmatprep.subr.mxu0 %v107
    %415 = vmatpush1.msra.mxu0 %v106
    %416 = vmatprep.subr.mxu0 %v103
    %417 = vmatpush1.msra.mxu0 %v102
    %418 = vmatprep.subr.mxu0 %v99
    %419 = vmatpush1.msra.mxu0 %v98
    %420 = vmatprep.subr.mxu0 %v95
    %421 = vmatpush1.msra.mxu0 %v94
    %422 = vmatprep.subr.mxu0 %v91
    %423 = vmatpush1.msra.mxu0 %v90
    %424 = vmatprep.subr.mxu0 %v87
    %425 = vmatpush1.msra.mxu0 %v86
    %426 = vmatprep.subr.mxu0 %v83
    %427 = vmatpush1.msra.mxu0 %v82
    %428 = vmatprep.subr.mxu0 0.0
    %429 = vmatpush2.msra.mxu0 0.0
    %430 = vmatprep.subr.mxu0 0.0
    %431 = vmatpush2.msra.mxu0 0.0
    %432 = vmatprep.subr.mxu0 0.0
    %433 = vmatpush2.msra.mxu0 0.0
    %434 = vmatprep.subr.mxu0 0.0
    %435 = vmatpush2.msra.mxu0 0.0
    %436 = vmatprep.subr.mxu0 0.0
    %437 = vmatpush2.msra.mxu0 0.0
    %438 = vmatprep.subr.mxu0 0.0
    %439 = vmatpush2.msra.mxu0 0.0
    %440 = vmatprep.subr.mxu0 0.0
    %441 = vmatpush2.msra.mxu0 0.0
    %442 = vmatprep.subr.mxu0 0.0
    %443 = vmatpush2.msra.mxu0 0.0
    %444 = vmatprep.subr.mxu0 0.0
    %445 = vmatpush2.msra.mxu0 0.0
    %446 = vmatprep.subr.mxu0 0.0
    %447 = vmatpush2.msra.mxu0 0.0
    %448 = vmatprep.subr.mxu0 0.0
    %449 = vmatpush2.msra.mxu0 0.0
    %450 = vmatprep.subr.mxu0 0.0
    %451 = vmatpush2.msra.mxu0 0.0
    %452 = vmatprep.subr.mxu0 0.0
    %453 = vmatpush2.msra.mxu0 0.0
    %454 = vmatprep.subr.mxu0 0.0
    %455 = vmatpush2.msra.mxu0 0.0
    %456 = vmatprep.subr.mxu0 0.0
    %457 = vmatpush2.msra.mxu0 0.0
    %458 = vmatprep.subr.mxu0 0.0
    %459 = vmatpush2.msra.mxu0 0.0
    %460 = vmatprep.mubr.f32.mxu0 0.0
    %461 = vmatmul.mubr.f32.gmra.mxu0 %v319
    %v462 = vpop.f32.mrf.mxu0
    %v463 = vadd.f32 0.0, %v462
    %v464 = vpop.f32.mrf.mxu0
    %v465 = vadd.f32 0.0, %v464
    %466 = vdwg.mxu0
    %v467 = vadd.f32 %v321, %v392
    %v468 = vadd.f32 %v322, %v394
    %v469 = vadd.f32 %v323, %v463
    %v470 = vadd.f32 %v324, %v465
    %v471 = vxor.u32 %v467, 2147483648
    %v472 = vxor.u32 %v468, 2147483648
    %v473 = vxor.u32 %v469, 2147483648
    %v474 = vmul.f32 %v471, 1.442695
    %v475 = vpow.pop %v474
    %v476 = vmul.f32 %v472, 1.442695
    %v477 = vpow.pop %v476
    %v478 = vmul.f32 %v473, 1.442695
    %v479 = vpow.pop %v478
    %v480 = vadd.f32 %v475, 1.0
    %v481 = vadd.f32 %v477, 1.0
    %v482 = vadd.f32 %v479, 1.0
    %v483 = vrcp.pop %v480
    %v484 = vmul.f32 1.0, %v483
    %v485 = vrcp.pop %v481
    %v486 = vmul.f32 1.0, %v485
    %v487 = vrcp.pop %v482
    %v488 = vmul.f32 1.0, %v487
    %v489 = vtanh.pop %v470
    %v490 = vmul.f32 %v486, %v317
    %v491 = vmul.f32 %v484, %v489
    %v492 = vadd.f32 %v490, %v491
    %v493 = vtanh.pop %v492
    %v494 = vmul.f32 %v488, %v493
    %s495 = scalar_lea.vmem [#allocation2], 64
    %v496 = vld [vmem:[%s495] sm:$0xff]
    %v497 = vld [vmem:[%s495 + $0x8] sm:$0xff]
    %v498 = vld [vmem:[%s495 + $0x10] sm:$0xff]
    %v499 = vld [vmem:[%s495 + $0x18] sm:$0xff]
    %500 = vmatprep.subr.mxu0 %v141
    %501 = vmatpush1.msra.mxu0 %v140
    %502 = vmatprep.subr.mxu0 %v137
    %503 = vmatpush1.msra.mxu0 %v136
    %504 = vmatprep.subr.mxu0 %v133
    %505 = vmatpush1.msra.mxu0 %v132
    %506 = vmatprep.subr.mxu0 %v129
    %507 = vmatpush1.msra.mxu0 %v128
    %508 = vmatprep.subr.mxu0 %v125
    %509 = vmatpush1.msra.mxu0 %v124
    %510 = vmatprep.subr.mxu0 %v121
    %511 = vmatpush1.msra.mxu0 %v120
    %512 = vmatprep.subr.mxu0 %v117
    %513 = vmatpush1.msra.mxu0 %v116
    %514 = vmatprep.subr.mxu0 %v113
    %515 = vmatpush1.msra.mxu0 %v112
    %516 = vmatprep.subr.mxu0 %v109
    %517 = vmatpush1.msra.mxu0 %v108
    %518 = vmatprep.subr.mxu0 %v105
    %519 = vmatpush1.msra.mxu0 %v104
    %520 = vmatprep.subr.mxu0 %v101
    %521 = vmatpush1.msra.mxu0 %v100
    %522 = vmatprep.subr.mxu0 %v97
    %523 = vmatpush1.msra.mxu0 %v96
    %524 = vmatprep.subr.mxu0 %v93
    %525 = vmatpush1.msra.mxu0 %v92
    %526 = vmatprep.subr.mxu0 %v89
    %527 = vmatpush1.msra.mxu0 %v88
    %528 = vmatprep.subr.mxu0 %v85
    %529 = vmatpush1.msra.mxu0 %v84
    %530 = vmatprep.subr.mxu0 %v81
    %531 = vmatpush1.msra.mxu0 %v80
    %532 = vmatprep.subr.mxu0 0.0
    %533 = vmatpush2.msra.mxu0 0.0
    %534 = vmatprep.subr.mxu0 0.0
    %535 = vmatpush2.msra.mxu0 0.0
    %536 = vmatprep.subr.mxu0 0.0
    %537 = vmatpush2.msra.mxu0 0.0
    %538 = vmatprep.subr.mxu0 0.0
    %539 = vmatpush2.msra.mxu0 0.0
    %540 = vmatprep.subr.mxu0 0.0
    %541 = vmatpush2.msra.mxu0 0.0
    %542 = vmatprep.subr.mxu0 0.0
    %543 = vmatpush2.msra.mxu0 0.0
    %544 = vmatprep.subr.mxu0 0.0
    %545 = vmatpush2.msra.mxu0 0.0
    %546 = vmatprep.subr.mxu0 0.0
    %547 = vmatpush2.msra.mxu0 0.0
    %548 = vmatprep.subr.mxu0 0.0
    %549 = vmatpush2.msra.mxu0 0.0
    %550 = vmatprep.subr.mxu0 0.0
    %551 = vmatpush2.msra.mxu0 0.0
    %552 = vmatprep.subr.mxu0 0.0
    %553 = vmatpush2.msra.mxu0 0.0
    %554 = vmatprep.subr.mxu0 0.0
    %555 = vmatpush2.msra.mxu0 0.0
    %556 = vmatprep.subr.mxu0 0.0
    %557 = vmatpush2.msra.mxu0 0.0
    %558 = vmatprep.subr.mxu0 0.0
    %559 = vmatpush2.msra.mxu0 0.0
    %560 = vmatprep.subr.mxu0 0.0
    %561 = vmatpush2.msra.mxu0 0.0
    %562 = vmatprep.subr.mxu0 0.0
    %563 = vmatpush2.msra.mxu0 0.0
    %564 = vmatprep.mubr.f32.mxu0 0.0
    %565 = vmatmul.mubr.f32.gmra.mxu0 %v494
    %v566 = vpop.f32.mrf.mxu0
    %v567 = vadd.f32 0.0, %v566
    %v568 = vpop.f32.mrf.mxu0
    %v569 = vadd.f32 0.0, %v568
    %570 = vdwg.mxu0
    %571 = vmatprep.subr.mxu0 %v143
    %572 = vmatpush1.msra.mxu0 %v142
    %573 = vmatprep.subr.mxu0 %v139
    %574 = vmatpush1.msra.mxu0 %v138
    %575 = vmatprep.subr.mxu0 %v135
    %576 = vmatpush1.msra.mxu0 %v134
    %577 = vmatprep.subr.mxu0 %v131
    %578 = vmatpush1.msra.mxu0 %v130
    %579 = vmatprep.subr.mxu0 %v127
    %580 = vmatpush1.msra.mxu0 %v126
    %581 = vmatprep.subr.mxu0 %v123
    %582 = vmatpush1.msra.mxu0 %v122
    %583 = vmatprep.subr.mxu0 %v119
    %584 = vmatpush1.msra.mxu0 %v118
    %585 = vmatprep.subr.mxu0 %v115
    %586 = vmatpush1.msra.mxu0 %v114
    %587 = vmatprep.subr.mxu0 %v111
    %588 = vmatpush1.msra.mxu0 %v110
    %589 = vmatprep.subr.mxu0 %v107
    %590 = vmatpush1.msra.mxu0 %v106
    %591 = vmatprep.subr.mxu0 %v103
    %592 = vmatpush1.msra.mxu0 %v102
    %593 = vmatprep.subr.mxu0 %v99
    %594 = vmatpush1.msra.mxu0 %v98
    %595 = vmatprep.subr.mxu0 %v95
    %596 = vmatpush1.msra.mxu0 %v94
    %597 = vmatprep.subr.mxu0 %v91
    %598 = vmatpush1.msra.mxu0 %v90
    %599 = vmatprep.subr.mxu0 %v87
    %600 = vmatpush1.msra.mxu0 %v86
    %601 = vmatprep.subr.mxu0 %v83
    %602 = vmatpush1.msra.mxu0 %v82
    %603 = vmatprep.subr.mxu0 0.0
    %604 = vmatpush2.msra.mxu0 0.0
    %605 = vmatprep.subr.mxu0 0.0
    %606 = vmatpush2.msra.mxu0 0.0
    %607 = vmatprep.subr.mxu0 0.0
    %608 = vmatpush2.msra.mxu0 0.0
    %609 = vmatprep.subr.mxu0 0.0
    %610 = vmatpush2.msra.mxu0 0.0
    %611 = vmatprep.subr.mxu0 0.0
    %612 = vmatpush2.msra.mxu0 0.0
    %613 = vmatprep.subr.mxu0 0.0
    %614 = vmatpush2.msra.mxu0 0.0
    %615 = vmatprep.subr.mxu0 0.0
    %616 = vmatpush2.msra.mxu0 0.0
    %617 = vmatprep.subr.mxu0 0.0
    %618 = vmatpush2.msra.mxu0 0.0
    %619 = vmatprep.subr.mxu0 0.0
    %620 = vmatpush2.msra.mxu0 0.0
    %621 = vmatprep.subr.mxu0 0.0
    %622 = vmatpush2.msra.mxu0 0.0
    %623 = vmatprep.subr.mxu0 0.0
    %624 = vmatpush2.msra.mxu0 0.0
    %625 = vmatprep.subr.mxu0 0.0
    %626 = vmatpush2.msra.mxu0 0.0
    %627 = vmatprep.subr.mxu0 0.0
    %628 = vmatpush2.msra.mxu0 0.0
    %629 = vmatprep.subr.mxu0 0.0
    %630 = vmatpush2.msra.mxu0 0.0
    %631 = vmatprep.subr.mxu0 0.0
    %632 = vmatpush2.msra.mxu0 0.0
    %633 = vmatprep.subr.mxu0 0.0
    %634 = vmatpush2.msra.mxu0 0.0
    %635 = vmatprep.mubr.f32.mxu0 0.0
    %636 = vmatmul.mubr.f32.gmra.mxu0 %v494
    %v637 = vpop.f32.mrf.mxu0
    %v638 = vadd.f32 0.0, %v637
    %v639 = vpop.f32.mrf.mxu0
    %v640 = vadd.f32 0.0, %v639
    %641 = vdwg.mxu0
    %v642 = vadd.f32 %v496, %v567
    %v643 = vadd.f32 %v497, %v569
    %v644 = vadd.f32 %v498, %v638
    %v645 = vadd.f32 %v499, %v640
    %v646 = vxor.u32 %v642, 2147483648
    %v647 = vxor.u32 %v643, 2147483648
    %v648 = vxor.u32 %v644, 2147483648
    %v649 = vmul.f32 %v646, 1.442695
    %v650 = vpow.pop %v649
    %v651 = vmul.f32 %v647, 1.442695
    %v652 = vpow.pop %v651
    %v653 = vmul.f32 %v648, 1.442695
    %v654 = vpow.pop %v653
    %v655 = vadd.f32 %v650, 1.0
    %v656 = vadd.f32 %v652, 1.0
    %v657 = vadd.f32 %v654, 1.0
    %v658 = vrcp.pop %v655
    %v659 = vmul.f32 1.0, %v658
    %v660 = vrcp.pop %v656
    %v661 = vmul.f32 1.0, %v660
    %v662 = vrcp.pop %v657
    %v663 = vmul.f32 1.0, %v662
    %v664 = vtanh.pop %v645
    %v665 = vmul.f32 %v661, %v492
    %v666 = vmul.f32 %v659, %v664
    %v667 = vadd.f32 %v665, %v666
    %v668 = vtanh.pop %v667
    %v669 = vmul.f32 %v663, %v668
    %s670 = scalar_lea.vmem [#allocation2], 96
    %v671 = vld [vmem:[%s670] sm:$0xff]
    %v672 = vld [vmem:[%s670 + $0x8] sm:$0xff]
    %v673 = vld [vmem:[%s670 + $0x10] sm:$0xff]
    %v674 = vld [vmem:[%s670 + $0x18] sm:$0xff]
    %675 = vmatprep.subr.mxu0 %v141
    %676 = vmatpush1.msra.mxu0 %v140
    %677 = vmatprep.subr.mxu0 %v137
    %678 = vmatpush1.msra.mxu0 %v136
    %679 = vmatprep.subr.mxu0 %v133
    %680 = vmatpush1.msra.mxu0 %v132
    %681 = vmatprep.subr.mxu0 %v129
    %682 = vmatpush1.msra.mxu0 %v128
    %683 = vmatprep.subr.mxu0 %v125
    %684 = vmatpush1.msra.mxu0 %v124
    %685 = vmatprep.subr.mxu0 %v121
    %686 = vmatpush1.msra.mxu0 %v120
    %687 = vmatprep.subr.mxu0 %v117
    %688 = vmatpush1.msra.mxu0 %v116
    %689 = vmatprep.subr.mxu0 %v113
    %690 = vmatpush1.msra.mxu0 %v112
    %691 = vmatprep.subr.mxu0 %v109
    %692 = vmatpush1.msra.mxu0 %v108
    %693 = vmatprep.subr.mxu0 %v105
    %694 = vmatpush1.msra.mxu0 %v104
    %695 = vmatprep.subr.mxu0 %v101
    %696 = vmatpush1.msra.mxu0 %v100
    %697 = vmatprep.subr.mxu0 %v97
    %698 = vmatpush1.msra.mxu0 %v96
    %699 = vmatprep.subr.mxu0 %v93
    %700 = vmatpush1.msra.mxu0 %v92
    %701 = vmatprep.subr.mxu0 %v89
    %702 = vmatpush1.msra.mxu0 %v88
    %703 = vmatprep.subr.mxu0 %v85
    %704 = vmatpush1.msra.mxu0 %v84
    %705 = vmatprep.subr.mxu0 %v81
    %706 = vmatpush1.msra.mxu0 %v80
    %707 = vmatprep.subr.mxu0 0.0
    %708 = vmatpush2.msra.mxu0 0.0
    %709 = vmatprep.subr.mxu0 0.0
    %710 = vmatpush2.msra.mxu0 0.0
    %711 = vmatprep.subr.mxu0 0.0
    %712 = vmatpush2.msra.mxu0 0.0
    %713 = vmatprep.subr.mxu0 0.0
    %714 = vmatpush2.msra.mxu0 0.0
    %715 = vmatprep.subr.mxu0 0.0
    %716 = vmatpush2.msra.mxu0 0.0
    %717 = vmatprep.subr.mxu0 0.0
    %718 = vmatpush2.msra.mxu0 0.0
    %719 = vmatprep.subr.mxu0 0.0
    %720 = vmatpush2.msra.mxu0 0.0
    %721 = vmatprep.subr.mxu0 0.0
    %722 = vmatpush2.msra.mxu0 0.0
    %723 = vmatprep.subr.mxu0 0.0
    %724 = vmatpush2.msra.mxu0 0.0
    %725 = vmatprep.subr.mxu0 0.0
    %726 = vmatpush2.msra.mxu0 0.0
    %727 = vmatprep.subr.mxu0 0.0
    %728 = vmatpush2.msra.mxu0 0.0
    %729 = vmatprep.subr.mxu0 0.0
    %730 = vmatpush2.msra.mxu0 0.0
    %731 = vmatprep.subr.mxu0 0.0
    %732 = vmatpush2.msra.mxu0 0.0
    %733 = vmatprep.subr.mxu0 0.0
    %734 = vmatpush2.msra.mxu0 0.0
    %735 = vmatprep.subr.mxu0 0.0
    %736 = vmatpush2.msra.mxu0 0.0
    %737 = vmatprep.subr.mxu0 0.0
    %738 = vmatpush2.msra.mxu0 0.0
    %739 = vmatprep.mubr.f32.mxu0 0.0
    %740 = vmatmul.mubr.f32.gmra.mxu0 %v669
    %v741 = vpop.f32.mrf.mxu0
    %v742 = vadd.f32 0.0, %v741
    %v743 = vpop.f32.mrf.mxu0
    %v744 = vadd.f32 0.0, %v743
    %745 = vdwg.mxu0
    %746 = vmatprep.subr.mxu0 %v143
    %747 = vmatpush1.msra.mxu0 %v142
    %748 = vmatprep.subr.mxu0 %v139
    %749 = vmatpush1.msra.mxu0 %v138
    %750 = vmatprep.subr.mxu0 %v135
    %751 = vmatpush1.msra.mxu0 %v134
    %752 = vmatprep.subr.mxu0 %v131
    %753 = vmatpush1.msra.mxu0 %v130
    %754 = vmatprep.subr.mxu0 %v127
    %755 = vmatpush1.msra.mxu0 %v126
    %756 = vmatprep.subr.mxu0 %v123
    %757 = vmatpush1.msra.mxu0 %v122
    %758 = vmatprep.subr.mxu0 %v119
    %759 = vmatpush1.msra.mxu0 %v118
    %760 = vmatprep.subr.mxu0 %v115
    %761 = vmatpush1.msra.mxu0 %v114
    %762 = vmatprep.subr.mxu0 %v111
    %763 = vmatpush1.msra.mxu0 %v110
    %764 = vmatprep.subr.mxu0 %v107
    %765 = vmatpush1.msra.mxu0 %v106
    %766 = vmatprep.subr.mxu0 %v103
    %767 = vmatpush1.msra.mxu0 %v102
    %768 = vmatprep.subr.mxu0 %v99
    %769 = vmatpush1.msra.mxu0 %v98
    %770 = vmatprep.subr.mxu0 %v95
    %771 = vmatpush1.msra.mxu0 %v94
    %772 = vmatprep.subr.mxu0 %v91
    %773 = vmatpush1.msra.mxu0 %v90
    %774 = vmatprep.subr.mxu0 %v87
    %775 = vmatpush1.msra.mxu0 %v86
    %776 = vmatprep.subr.mxu0 %v83
    %777 = vmatpush1.msra.mxu0 %v82
    %778 = vmatprep.subr.mxu0 0.0
    %779 = vmatpush2.msra.mxu0 0.0
    %780 = vmatprep.subr.mxu0 0.0
    %781 = vmatpush2.msra.mxu0 0.0
    %782 = vmatprep.subr.mxu0 0.0
    %783 = vmatpush2.msra.mxu0 0.0
    %784 = vmatprep.subr.mxu0 0.0
    %785 = vmatpush2.msra.mxu0 0.0
    %786 = vmatprep.subr.mxu0 0.0
    %787 = vmatpush2.msra.mxu0 0.0
    %788 = vmatprep.subr.mxu0 0.0
    %789 = vmatpush2.msra.mxu0 0.0
    %790 = vmatprep.subr.mxu0 0.0
    %791 = vmatpush2.msra.mxu0 0.0
    %792 = vmatprep.subr.mxu0 0.0
    %793 = vmatpush2.msra.mxu0 0.0
    %794 = vmatprep.subr.mxu0 0.0
    %795 = vmatpush2.msra.mxu0 0.0
    %796 = vmatprep.subr.mxu0 0.0
    %797 = vmatpush2.msra.mxu0 0.0
    %798 = vmatprep.subr.mxu0 0.0
    %799 = vmatpush2.msra.mxu0 0.0
    %800 = vmatprep.subr.mxu0 0.0
    %801 = vmatpush2.msra.mxu0 0.0
    %802 = vmatprep.subr.mxu0 0.0
    %803 = vmatpush2.msra.mxu0 0.0
    %804 = vmatprep.subr.mxu0 0.0
    %805 = vmatpush2.msra.mxu0 0.0
    %806 = vmatprep.subr.mxu0 0.0
    %807 = vmatpush2.msra.mxu0 0.0
    %808 = vmatprep.subr.mxu0 0.0
    %809 = vmatpush2.msra.mxu0 0.0
    %810 = vmatprep.mubr.f32.mxu0 0.0
    %811 = vmatmul.mubr.f32.gmra.mxu0 %v669
    %v812 = vpop.f32.mrf.mxu0
    %v813 = vadd.f32 0.0, %v812
    %v814 = vpop.f32.mrf.mxu0
    %v815 = vadd.f32 0.0, %v814
    %816 = vdwg.mxu0
    %v817 = vadd.f32 %v671, %v742
    %v818 = vadd.f32 %v672, %v744
    %v819 = vadd.f32 %v673, %v813
    %v820 = vadd.f32 %v674, %v815
    %v821 = vxor.u32 %v817, 2147483648
    %v822 = vxor.u32 %v818, 2147483648
    %v823 = vxor.u32 %v819, 2147483648
    %v824 = vmul.f32 %v821, 1.442695
    %v825 = vpow.pop %v824
    %v826 = vmul.f32 %v822, 1.442695
    %v827 = vpow.pop %v826
    %v828 = vmul.f32 %v823, 1.442695
    %v829 = vpow.pop %v828
    %v830 = vadd.f32 %v825, 1.0
    %v831 = vadd.f32 %v827, 1.0
    %v832 = vadd.f32 %v829, 1.0
    %v833 = vrcp.pop %v830
    %v834 = vmul.f32 1.0, %v833
    %v835 = vrcp.pop %v831
    %v836 = vmul.f32 1.0, %v835
    %v837 = vrcp.pop %v832
    %v838 = vmul.f32 1.0, %v837
    %v839 = vtanh.pop %v820
    %v840 = vmul.f32 %v836, %v667
    %v841 = vmul.f32 %v834, %v839
    %v842 = vadd.f32 %v840, %v841
    %v843 = vtanh.pop %v842
    %v844 = vmul.f32 %v838, %v843
    %s845 = scalar_lea.vmem [#allocation2], 128
    %v846 = vld [vmem:[%s845] sm:$0xff]
    %v847 = vld [vmem:[%s845 + $0x8] sm:$0xff]
    %v848 = vld [vmem:[%s845 + $0x10] sm:$0xff]
    %v849 = vld [vmem:[%s845 + $0x18] sm:$0xff]
    %850 = vmatprep.subr.mxu0 %v141
    %851 = vmatpush1.msra.mxu0 %v140
    %852 = vmatprep.subr.mxu0 %v137
    %853 = vmatpush1.msra.mxu0 %v136
    %854 = vmatprep.subr.mxu0 %v133
    %855 = vmatpush1.msra.mxu0 %v132
    %856 = vmatprep.subr.mxu0 %v129
    %857 = vmatpush1.msra.mxu0 %v128
    %858 = vmatprep.subr.mxu0 %v125
    %859 = vmatpush1.msra.mxu0 %v124
    %860 = vmatprep.subr.mxu0 %v121
    %861 = vmatpush1.msra.mxu0 %v120
    %862 = vmatprep.subr.mxu0 %v117
    %863 = vmatpush1.msra.mxu0 %v116
    %864 = vmatprep.subr.mxu0 %v113
    %865 = vmatpush1.msra.mxu0 %v112
    %866 = vmatprep.subr.mxu0 %v109
    %867 = vmatpush1.msra.mxu0 %v108
    %868 = vmatprep.subr.mxu0 %v105
    %869 = vmatpush1.msra.mxu0 %v104
    %870 = vmatprep.subr.mxu0 %v101
    %871 = vmatpush1.msra.mxu0 %v100
    %872 = vmatprep.subr.mxu0 %v97
    %873 = vmatpush1.msra.mxu0 %v96
    %874 = vmatprep.subr.mxu0 %v93
    %875 = vmatpush1.msra.mxu0 %v92
    %876 = vmatprep.subr.mxu0 %v89
    %877 = vmatpush1.msra.mxu0 %v88
    %878 = vmatprep.subr.mxu0 %v85
    %879 = vmatpush1.msra.mxu0 %v84
    %880 = vmatprep.subr.mxu0 %v81
    %881 = vmatpush1.msra.mxu0 %v80
    %882 = vmatprep.subr.mxu0 0.0
    %883 = vmatpush2.msra.mxu0 0.0
    %884 = vmatprep.subr.mxu0 0.0
    %885 = vmatpush2.msra.mxu0 0.0
    %886 = vmatprep.subr.mxu0 0.0
    %887 = vmatpush2.msra.mxu0 0.0
    %888 = vmatprep.subr.mxu0 0.0
    %889 = vmatpush2.msra.mxu0 0.0
    %890 = vmatprep.subr.mxu0 0.0
    %891 = vmatpush2.msra.mxu0 0.0
    %892 = vmatprep.subr.mxu0 0.0
    %893 = vmatpush2.msra.mxu0 0.0
    %894 = vmatprep.subr.mxu0 0.0
    %895 = vmatpush2.msra.mxu0 0.0
    %896 = vmatprep.subr.mxu0 0.0
    %897 = vmatpush2.msra.mxu0 0.0
    %898 = vmatprep.subr.mxu0 0.0
    %899 = vmatpush2.msra.mxu0 0.0
    %900 = vmatprep.subr.mxu0 0.0
    %901 = vmatpush2.msra.mxu0 0.0
    %902 = vmatprep.subr.mxu0 0.0
    %903 = vmatpush2.msra.mxu0 0.0
    %904 = vmatprep.subr.mxu0 0.0
    %905 = vmatpush2.msra.mxu0 0.0
    %906 = vmatprep.subr.mxu0 0.0
    %907 = vmatpush2.msra.mxu0 0.0
    %908 = vmatprep.subr.mxu0 0.0
    %909 = vmatpush2.msra.mxu0 0.0
    %910 = vmatprep.subr.mxu0 0.0
    %911 = vmatpush2.msra.mxu0 0.0
    %912 = vmatprep.subr.mxu0 0.0
    %913 = vmatpush2.msra.mxu0 0.0
    %914 = vmatprep.mubr.f32.mxu0 0.0
    %915 = vmatmul.mubr.f32.gmra.mxu0 %v844
    %v916 = vpop.f32.mrf.mxu0
    %v917 = vadd.f32 0.0, %v916
    %v918 = vpop.f32.mrf.mxu0
    %v919 = vadd.f32 0.0, %v918
    %920 = vdwg.mxu0
    %921 = vmatprep.subr.mxu0 %v143
    %922 = vmatpush1.msra.mxu0 %v142
    %923 = vmatprep.subr.mxu0 %v139
    %924 = vmatpush1.msra.mxu0 %v138
    %925 = vmatprep.subr.mxu0 %v135
    %926 = vmatpush1.msra.mxu0 %v134
    %927 = vmatprep.subr.mxu0 %v131
    %928 = vmatpush1.msra.mxu0 %v130
    %929 = vmatprep.subr.mxu0 %v127
    %930 = vmatpush1.msra.mxu0 %v126
    %931 = vmatprep.subr.mxu0 %v123
    %932 = vmatpush1.msra.mxu0 %v122
    %933 = vmatprep.subr.mxu0 %v119
    %934 = vmatpush1.msra.mxu0 %v118
    %935 = vmatprep.subr.mxu0 %v115
    %936 = vmatpush1.msra.mxu0 %v114
    %937 = vmatprep.subr.mxu0 %v111
    %938 = vmatpush1.msra.mxu0 %v110
    %939 = vmatprep.subr.mxu0 %v107
    %940 = vmatpush1.msra.mxu0 %v106
    %941 = vmatprep.subr.mxu0 %v103
    %942 = vmatpush1.msra.mxu0 %v102
    %943 = vmatprep.subr.mxu0 %v99
    %944 = vmatpush1.msra.mxu0 %v98
    %945 = vmatprep.subr.mxu0 %v95
    %946 = vmatpush1.msra.mxu0 %v94
    %947 = vmatprep.subr.mxu0 %v91
    %948 = vmatpush1.msra.mxu0 %v90
    %949 = vmatprep.subr.mxu0 %v87
    %950 = vmatpush1.msra.mxu0 %v86
    %951 = vmatprep.subr.mxu0 %v83
    %952 = vmatpush1.msra.mxu0 %v82
    %953 = vmatprep.subr.mxu0 0.0
    %954 = vmatpush2.msra.mxu0 0.0
    %955 = vmatprep.subr.mxu0 0.0
    %956 = vmatpush2.msra.mxu0 0.0
    %957 = vmatprep.subr.mxu0 0.0
    %958 = vmatpush2.msra.mxu0 0.0
    %959 = vmatprep.subr.mxu0 0.0
    %960 = vmatpush2.msra.mxu0 0.0
    %961 = vmatprep.subr.mxu0 0.0
    %962 = vmatpush2.msra.mxu0 0.0
    %963 = vmatprep.subr.mxu0 0.0
    %964 = vmatpush2.msra.mxu0 0.0
    %965 = vmatprep.subr.mxu0 0.0
    %966 = vmatpush2.msra.mxu0 0.0
    %967 = vmatprep.subr.mxu0 0.0
    %968 = vmatpush2.msra.mxu0 0.0
    %969 = vmatprep.subr.mxu0 0.0
    %970 = vmatpush2.msra.mxu0 0.0
    %971 = vmatprep.subr.mxu0 0.0
    %972 = vmatpush2.msra.mxu0 0.0
    %973 = vmatprep.subr.mxu0 0.0
    %974 = vmatpush2.msra.mxu0 0.0
    %975 = vmatprep.subr.mxu0 0.0
    %976 = vmatpush2.msra.mxu0 0.0
    %977 = vmatprep.subr.mxu0 0.0
    %978 = vmatpush2.msra.mxu0 0.0
    %979 = vmatprep.subr.mxu0 0.0
    %980 = vmatpush2.msra.mxu0 0.0
    %981 = vmatprep.subr.mxu0 0.0
    %982 = vmatpush2.msra.mxu0 0.0
    %983 = vmatprep.subr.mxu0 0.0
    %984 = vmatpush2.msra.mxu0 0.0
    %985 = vmatprep.mubr.f32.mxu0 0.0
    %986 = vmatmul.mubr.f32.gmra.mxu0 %v844
    %v987 = vpop.f32.mrf.mxu0
    %v988 = vadd.f32 0.0, %v987
    %v989 = vpop.f32.mrf.mxu0
    %v990 = vadd.f32 0.0, %v989
    %991 = vdwg.mxu0
    %v992 = vadd.f32 %v846, %v917
    %v993 = vadd.f32 %v847, %v919
    %v994 = vadd.f32 %v848, %v988
    %v995 = vadd.f32 %v849, %v990
    %v996 = vxor.u32 %v992, 2147483648
    %v997 = vxor.u32 %v993, 2147483648
    %v998 = vxor.u32 %v994, 2147483648
    %v999 = vmul.f32 %v996, 1.442695
    %v1000 = vpow.pop %v999
    %v1001 = vmul.f32 %v997, 1.442695
    %v1002 = vpow.pop %v1001
    %v1003 = vmul.f32 %v998, 1.442695
    %v1004 = vpow.pop %v1003
    %v1005 = vadd.f32 %v1000, 1.0
    %v1006 = vadd.f32 %v1002, 1.0
    %v1007 = vadd.f32 %v1004, 1.0
    %v1008 = vrcp.pop %v1005
    %v1009 = vmul.f32 1.0, %v1008
    %v1010 = vrcp.pop %v1006
    %v1011 = vmul.f32 1.0, %v1010
    %v1012 = vrcp.pop %v1007
    %v1013 = vmul.f32 1.0, %v1012
    %v1014 = vtanh.pop %v995
    %v1015 = vmul.f32 %v1011, %v842
    %v1016 = vmul.f32 %v1009, %v1014
    %v1017 = vadd.f32 %v1015, %v1016
    %v1018 = vtanh.pop %v1017
    %v1019 = vmul.f32 %v1013, %v1018
    %s1020 = scalar_lea.vmem [#allocation2], 160
    %v1021 = vld [vmem:[%s1020] sm:$0xff]
    %v1022 = vld [vmem:[%s1020 + $0x8] sm:$0xff]
    %v1023 = vld [vmem:[%s1020 + $0x10] sm:$0xff]
    %v1024 = vld [vmem:[%s1020 + $0x18] sm:$0xff]
    %1025 = vmatprep.subr.mxu0 %v141
    %1026 = vmatpush1.msra.mxu0 %v140
    %1027 = vmatprep.subr.mxu0 %v137
    %1028 = vmatpush1.msra.mxu0 %v136
    %1029 = vmatprep.subr.mxu0 %v133
    %1030 = vmatpush1.msra.mxu0 %v132
    %1031 = vmatprep.subr.mxu0 %v129
    %1032 = vmatpush1.msra.mxu0 %v128
    %1033 = vmatprep.subr.mxu0 %v125
    %1034 = vmatpush1.msra.mxu0 %v124
    %1035 = vmatprep.subr.mxu0 %v121
    %1036 = vmatpush1.msra.mxu0 %v120
    %1037 = vmatprep.subr.mxu0 %v117
    %1038 = vmatpush1.msra.mxu0 %v116
    %1039 = vmatprep.subr.mxu0 %v113
    %1040 = vmatpush1.msra.mxu0 %v112
    %1041 = vmatprep.subr.mxu0 %v109
    %1042 = vmatpush1.msra.mxu0 %v108
    %1043 = vmatprep.subr.mxu0 %v105
    %1044 = vmatpush1.msra.mxu0 %v104
    %1045 = vmatprep.subr.mxu0 %v101
    %1046 = vmatpush1.msra.mxu0 %v100
    %1047 = vmatprep.subr.mxu0 %v97
    %1048 = vmatpush1.msra.mxu0 %v96
    %1049 = vmatprep.subr.mxu0 %v93
    %1050 = vmatpush1.msra.mxu0 %v92
    %1051 = vmatprep.subr.mxu0 %v89
    %1052 = vmatpush1.msra.mxu0 %v88
    %1053 = vmatprep.subr.mxu0 %v85
    %1054 = vmatpush1.msra.mxu0 %v84
    %1055 = vmatprep.subr.mxu0 %v81
    %1056 = vmatpush1.msra.mxu0 %v80
    %1057 = vmatprep.subr.mxu0 0.0
    %1058 = vmatpush2.msra.mxu0 0.0
    %1059 = vmatprep.subr.mxu0 0.0
    %1060 = vmatpush2.msra.mxu0 0.0
    %1061 = vmatprep.subr.mxu0 0.0
    %1062 = vmatpush2.msra.mxu0 0.0
    %1063 = vmatprep.subr.mxu0 0.0
    %1064 = vmatpush2.msra.mxu0 0.0
    %1065 = vmatprep.subr.mxu0 0.0
    %1066 = vmatpush2.msra.mxu0 0.0
    %1067 = vmatprep.subr.mxu0 0.0
    %1068 = vmatpush2.msra.mxu0 0.0
    %1069 = vmatprep.subr.mxu0 0.0
    %1070 = vmatpush2.msra.mxu0 0.0
    %1071 = vmatprep.subr.mxu0 0.0
    %1072 = vmatpush2.msra.mxu0 0.0
    %1073 = vmatprep.subr.mxu0 0.0
    %1074 = vmatpush2.msra.mxu0 0.0
    %1075 = vmatprep.subr.mxu0 0.0
    %1076 = vmatpush2.msra.mxu0 0.0
    %1077 = vmatprep.subr.mxu0 0.0
    %1078 = vmatpush2.msra.mxu0 0.0
    %1079 = vmatprep.subr.mxu0 0.0
    %1080 = vmatpush2.msra.mxu0 0.0
    %1081 = vmatprep.subr.mxu0 0.0
    %1082 = vmatpush2.msra.mxu0 0.0
    %1083 = vmatprep.subr.mxu0 0.0
    %1084 = vmatpush2.msra.mxu0 0.0
    %1085 = vmatprep.subr.mxu0 0.0
    %1086 = vmatpush2.msra.mxu0 0.0
    %1087 = vmatprep.subr.mxu0 0.0
    %1088 = vmatpush2.msra.mxu0 0.0
    %1089 = vmatprep.mubr.f32.mxu0 0.0
    %1090 = vmatmul.mubr.f32.gmra.mxu0 %v1019
    %v1091 = vpop.f32.mrf.mxu0
    %v1092 = vadd.f32 0.0, %v1091
    %v1093 = vpop.f32.mrf.mxu0
    %v1094 = vadd.f32 0.0, %v1093
    %1095 = vdwg.mxu0
    %1096 = vmatprep.subr.mxu0 %v143
    %1097 = vmatpush1.msra.mxu0 %v142
    %1098 = vmatprep.subr.mxu0 %v139
    %1099 = vmatpush1.msra.mxu0 %v138
    %1100 = vmatprep.subr.mxu0 %v135
    %1101 = vmatpush1.msra.mxu0 %v134
    %1102 = vmatprep.subr.mxu0 %v131
    %1103 = vmatpush1.msra.mxu0 %v130
    %1104 = vmatprep.subr.mxu0 %v127
    %1105 = vmatpush1.msra.mxu0 %v126
    %1106 = vmatprep.subr.mxu0 %v123
    %1107 = vmatpush1.msra.mxu0 %v122
    %1108 = vmatprep.subr.mxu0 %v119
    %1109 = vmatpush1.msra.mxu0 %v118
    %1110 = vmatprep.subr.mxu0 %v115
    %1111 = vmatpush1.msra.mxu0 %v114
    %1112 = vmatprep.subr.mxu0 %v111
    %1113 = vmatpush1.msra.mxu0 %v110
    %1114 = vmatprep.subr.mxu0 %v107
    %1115 = vmatpush1.msra.mxu0 %v106
    %1116 = vmatprep.subr.mxu0 %v103
    %1117 = vmatpush1.msra.mxu0 %v102
    %1118 = vmatprep.subr.mxu0 %v99
    %1119 = vmatpush1.msra.mxu0 %v98
    %1120 = vmatprep.subr.mxu0 %v95
    %1121 = vmatpush1.msra.mxu0 %v94
    %1122 = vmatprep.subr.mxu0 %v91
    %1123 = vmatpush1.msra.mxu0 %v90
    %1124 = vmatprep.subr.mxu0 %v87
    %1125 = vmatpush1.msra.mxu0 %v86
    %1126 = vmatprep.subr.mxu0 %v83
    %1127 = vmatpush1.msra.mxu0 %v82
    %1128 = vmatprep.subr.mxu0 0.0
    %1129 = vmatpush2.msra.mxu0 0.0
    %1130 = vmatprep.subr.mxu0 0.0
    %1131 = vmatpush2.msra.mxu0 0.0
    %1132 = vmatprep.subr.mxu0 0.0
    %1133 = vmatpush2.msra.mxu0 0.0
    %1134 = vmatprep.subr.mxu0 0.0
    %1135 = vmatpush2.msra.mxu0 0.0
    %1136 = vmatprep.subr.mxu0 0.0
    %1137 = vmatpush2.msra.mxu0 0.0
    %1138 = vmatprep.subr.mxu0 0.0
    %1139 = vmatpush2.msra.mxu0 0.0
    %1140 = vmatprep.subr.mxu0 0.0
    %1141 = vmatpush2.msra.mxu0 0.0
    %1142 = vmatprep.subr.mxu0 0.0
    %1143 = vmatpush2.msra.mxu0 0.0
    %1144 = vmatprep.subr.mxu0 0.0
    %1145 = vmatpush2.msra.mxu0 0.0
    %1146 = vmatprep.subr.mxu0 0.0
    %1147 = vmatpush2.msra.mxu0 0.0
    %1148 = vmatprep.subr.mxu0 0.0
    %1149 = vmatpush2.msra.mxu0 0.0
    %1150 = vmatprep.subr.mxu0 0.0
    %1151 = vmatpush2.msra.mxu0 0.0
    %1152 = vmatprep.subr.mxu0 0.0
    %1153 = vmatpush2.msra.mxu0 0.0
    %1154 = vmatprep.subr.mxu0 0.0
    %1155 = vmatpush2.msra.mxu0 0.0
    %1156 = vmatprep.subr.mxu0 0.0
    %1157 = vmatpush2.msra.mxu0 0.0
    %1158 = vmatprep.subr.mxu0 0.0
    %1159 = vmatpush2.msra.mxu0 0.0
    %1160 = vmatprep.mubr.f32.mxu0 0.0
    %1161 = vmatmul.mubr.f32.gmra.mxu0 %v1019
    %v1162 = vpop.f32.mrf.mxu0
    %v1163 = vadd.f32 0.0, %v1162
    %v1164 = vpop.f32.mrf.mxu0
    %v1165 = vadd.f32 0.0, %v1164
    %1166 = vdwg.mxu0
    %v1167 = vadd.f32 %v1021, %v1092
    %v1168 = vadd.f32 %v1022, %v1094
    %v1169 = vadd.f32 %v1023, %v1163
    %v1170 = vadd.f32 %v1024, %v1165
    %v1171 = vxor.u32 %v1167, 2147483648
    %v1172 = vxor.u32 %v1168, 2147483648
    %v1173 = vxor.u32 %v1169, 2147483648
    %v1174 = vmul.f32 %v1171, 1.442695
    %v1175 = vpow.pop %v1174
    %v1176 = vmul.f32 %v1172, 1.442695
    %v1177 = vpow.pop %v1176
    %v1178 = vmul.f32 %v1173, 1.442695
    %v1179 = vpow.pop %v1178
    %v1180 = vadd.f32 %v1175, 1.0
    %v1181 = vadd.f32 %v1177, 1.0
    %v1182 = vadd.f32 %v1179, 1.0
    %v1183 = vrcp.pop %v1180
    %v1184 = vmul.f32 1.0, %v1183
    %v1185 = vrcp.pop %v1181
    %v1186 = vmul.f32 1.0, %v1185
    %v1187 = vrcp.pop %v1182
    %v1188 = vmul.f32 1.0, %v1187
    %v1189 = vtanh.pop %v1170
    %v1190 = vmul.f32 %v1186, %v1017
    %v1191 = vmul.f32 %v1184, %v1189
    %v1192 = vadd.f32 %v1190, %v1191
    %v1193 = vtanh.pop %v1192
    %v1194 = vmul.f32 %v1188, %v1193
    %s1195 = scalar_lea.vmem [#allocation2], 192
    %v1196 = vld [vmem:[%s1195] sm:$0xff]
    %v1197 = vld [vmem:[%s1195 + $0x8] sm:$0xff]
    %v1198 = vld [vmem:[%s1195 + $0x10] sm:$0xff]
    %v1199 = vld [vmem:[%s1195 + $0x18] sm:$0xff]
    %1200 = vmatprep.subr.mxu0 %v141
    %1201 = vmatpush1.msra.mxu0 %v140
    %1202 = vmatprep.subr.mxu0 %v137
    %1203 = vmatpush1.msra.mxu0 %v136
    %1204 = vmatprep.subr.mxu0 %v133
    %1205 = vmatpush1.msra.mxu0 %v132
    %1206 = vmatprep.subr.mxu0 %v129
    %1207 = vmatpush1.msra.mxu0 %v128
    %1208 = vmatprep.subr.mxu0 %v125
    %1209 = vmatpush1.msra.mxu0 %v124
    %1210 = vmatprep.subr.mxu0 %v121
    %1211 = vmatpush1.msra.mxu0 %v120
    %1212 = vmatprep.subr.mxu0 %v117
    %1213 = vmatpush1.msra.mxu0 %v116
    %1214 = vmatprep.subr.mxu0 %v113
    %1215 = vmatpush1.msra.mxu0 %v112
    %1216 = vmatprep.subr.mxu0 %v109
    %1217 = vmatpush1.msra.mxu0 %v108
    %1218 = vmatprep.subr.mxu0 %v105
    %1219 = vmatpush1.msra.mxu0 %v104
    %1220 = vmatprep.subr.mxu0 %v101
    %1221 = vmatpush1.msra.mxu0 %v100
    %1222 = vmatprep.subr.mxu0 %v97
    %1223 = vmatpush1.msra.mxu0 %v96
    %1224 = vmatprep.subr.mxu0 %v93
    %1225 = vmatpush1.msra.mxu0 %v92
    %1226 = vmatprep.subr.mxu0 %v89
    %1227 = vmatpush1.msra.mxu0 %v88
    %1228 = vmatprep.subr.mxu0 %v85
    %1229 = vmatpush1.msra.mxu0 %v84
    %1230 = vmatprep.subr.mxu0 %v81
    %1231 = vmatpush1.msra.mxu0 %v80
    %1232 = vmatprep.subr.mxu0 0.0
    %1233 = vmatpush2.msra.mxu0 0.0
    %1234 = vmatprep.subr.mxu0 0.0
    %1235 = vmatpush2.msra.mxu0 0.0
    %1236 = vmatprep.subr.mxu0 0.0
    %1237 = vmatpush2.msra.mxu0 0.0
    %1238 = vmatprep.subr.mxu0 0.0
    %1239 = vmatpush2.msra.mxu0 0.0
    %1240 = vmatprep.subr.mxu0 0.0
    %1241 = vmatpush2.msra.mxu0 0.0
    %1242 = vmatprep.subr.mxu0 0.0
    %1243 = vmatpush2.msra.mxu0 0.0
    %1244 = vmatprep.subr.mxu0 0.0
    %1245 = vmatpush2.msra.mxu0 0.0
    %1246 = vmatprep.subr.mxu0 0.0
    %1247 = vmatpush2.msra.mxu0 0.0
    %1248 = vmatprep.subr.mxu0 0.0
    %1249 = vmatpush2.msra.mxu0 0.0
    %1250 = vmatprep.subr.mxu0 0.0
    %1251 = vmatpush2.msra.mxu0 0.0
    %1252 = vmatprep.subr.mxu0 0.0
    %1253 = vmatpush2.msra.mxu0 0.0
    %1254 = vmatprep.subr.mxu0 0.0
    %1255 = vmatpush2.msra.mxu0 0.0
    %1256 = vmatprep.subr.mxu0 0.0
    %1257 = vmatpush2.msra.mxu0 0.0
    %1258 = vmatprep.subr.mxu0 0.0
    %1259 = vmatpush2.msra.mxu0 0.0
    %1260 = vmatprep.subr.mxu0 0.0
    %1261 = vmatpush2.msra.mxu0 0.0
    %1262 = vmatprep.subr.mxu0 0.0
    %1263 = vmatpush2.msra.mxu0 0.0
    %1264 = vmatprep.mubr.f32.mxu0 0.0
    %1265 = vmatmul.mubr.f32.gmra.mxu0 %v1194
    %v1266 = vpop.f32.mrf.mxu0
    %v1267 = vadd.f32 0.0, %v1266
    %v1268 = vpop.f32.mrf.mxu0
    %v1269 = vadd.f32 0.0, %v1268
    %1270 = vdwg.mxu0
    %1271 = vmatprep.subr.mxu0 %v143
    %1272 = vmatpush1.msra.mxu0 %v142
    %1273 = vmatprep.subr.mxu0 %v139
    %1274 = vmatpush1.msra.mxu0 %v138
    %1275 = vmatprep.subr.mxu0 %v135
    %1276 = vmatpush1.msra.mxu0 %v134
    %1277 = vmatprep.subr.mxu0 %v131
    %1278 = vmatpush1.msra.mxu0 %v130
    %1279 = vmatprep.subr.mxu0 %v127
    %1280 = vmatpush1.msra.mxu0 %v126
    %1281 = vmatprep.subr.mxu0 %v123
    %1282 = vmatpush1.msra.mxu0 %v122
    %1283 = vmatprep.subr.mxu0 %v119
    %1284 = vmatpush1.msra.mxu0 %v118
    %1285 = vmatprep.subr.mxu0 %v115
    %1286 = vmatpush1.msra.mxu0 %v114
    %1287 = vmatprep.subr.mxu0 %v111
    %1288 = vmatpush1.msra.mxu0 %v110
    %1289 = vmatprep.subr.mxu0 %v107
    %1290 = vmatpush1.msra.mxu0 %v106
    %1291 = vmatprep.subr.mxu0 %v103
    %1292 = vmatpush1.msra.mxu0 %v102
    %1293 = vmatprep.subr.mxu0 %v99
    %1294 = vmatpush1.msra.mxu0 %v98
    %1295 = vmatprep.subr.mxu0 %v95
    %1296 = vmatpush1.msra.mxu0 %v94
    %1297 = vmatprep.subr.mxu0 %v91
    %1298 = vmatpush1.msra.mxu0 %v90
    %1299 = vmatprep.subr.mxu0 %v87
    %1300 = vmatpush1.msra.mxu0 %v86
    %1301 = vmatprep.subr.mxu0 %v83
    %1302 = vmatpush1.msra.mxu0 %v82
    %1303 = vmatprep.subr.mxu0 0.0
    %1304 = vmatpush2.msra.mxu0 0.0
    %1305 = vmatprep.subr.mxu0 0.0
    %1306 = vmatpush2.msra.mxu0 0.0
    %1307 = vmatprep.subr.mxu0 0.0
    %1308 = vmatpush2.msra.mxu0 0.0
    %1309 = vmatprep.subr.mxu0 0.0
    %1310 = vmatpush2.msra.mxu0 0.0
    %1311 = vmatprep.subr.mxu0 0.0
    %1312 = vmatpush2.msra.mxu0 0.0
    %1313 = vmatprep.subr.mxu0 0.0
    %1314 = vmatpush2.msra.mxu0 0.0
    %1315 = vmatprep.subr.mxu0 0.0
    %1316 = vmatpush2.msra.mxu0 0.0
    %1317 = vmatprep.subr.mxu0 0.0
    %1318 = vmatpush2.msra.mxu0 0.0
    %1319 = vmatprep.subr.mxu0 0.0
    %1320 = vmatpush2.msra.mxu0 0.0
    %1321 = vmatprep.subr.mxu0 0.0
    %1322 = vmatpush2.msra.mxu0 0.0
    %1323 = vmatprep.subr.mxu0 0.0
    %1324 = vmatpush2.msra.mxu0 0.0
    %1325 = vmatprep.subr.mxu0 0.0
    %1326 = vmatpush2.msra.mxu0 0.0
    %1327 = vmatprep.subr.mxu0 0.0
    %1328 = vmatpush2.msra.mxu0 0.0
    %1329 = vmatprep.subr.mxu0 0.0
    %1330 = vmatpush2.msra.mxu0 0.0
    %1331 = vmatprep.subr.mxu0 0.0
    %1332 = vmatpush2.msra.mxu0 0.0
    %1333 = vmatprep.subr.mxu0 0.0
    %1334 = vmatpush2.msra.mxu0 0.0
    %1335 = vmatprep.mubr.f32.mxu0 0.0
    %1336 = vmatmul.mubr.f32.gmra.mxu0 %v1194
    %v1337 = vpop.f32.mrf.mxu0
    %v1338 = vadd.f32 0.0, %v1337
    %v1339 = vpop.f32.mrf.mxu0
    %v1340 = vadd.f32 0.0, %v1339
    %1341 = vdwg.mxu0
    %v1342 = vadd.f32 %v1196, %v1267
    %v1343 = vadd.f32 %v1197, %v1269
    %v1344 = vadd.f32 %v1198, %v1338
    %v1345 = vadd.f32 %v1199, %v1340
    %v1346 = vxor.u32 %v1342, 2147483648
    %v1347 = vxor.u32 %v1343, 2147483648
    %v1348 = vxor.u32 %v1344, 2147483648
    %v1349 = vmul.f32 %v1346, 1.442695
    %v1350 = vpow.pop %v1349
    %v1351 = vmul.f32 %v1347, 1.442695
    %v1352 = vpow.pop %v1351
    %v1353 = vmul.f32 %v1348, 1.442695
    %v1354 = vpow.pop %v1353
    %v1355 = vadd.f32 %v1350, 1.0
    %v1356 = vadd.f32 %v1352, 1.0
    %v1357 = vadd.f32 %v1354, 1.0
    %v1358 = vrcp.pop %v1355
    %v1359 = vmul.f32 1.0, %v1358
    %v1360 = vrcp.pop %v1356
    %v1361 = vmul.f32 1.0, %v1360
    %v1362 = vrcp.pop %v1357
    %v1363 = vmul.f32 1.0, %v1362
    %v1364 = vtanh.pop %v1345
    %v1365 = vmul.f32 %v1361, %v1192
    %v1366 = vmul.f32 %v1359, %v1364
    %v1367 = vadd.f32 %v1365, %v1366
    %v1368 = vtanh.pop %v1367
    %v1369 = vmul.f32 %v1363, %v1368
    %s1370 = scalar_lea.vmem [#allocation2], 224
    %v1371 = vld [vmem:[%s1370] sm:$0xff]
    %v1372 = vld [vmem:[%s1370 + $0x8] sm:$0xff]
    %v1373 = vld [vmem:[%s1370 + $0x10] sm:$0xff]
    %v1374 = vld [vmem:[%s1370 + $0x18] sm:$0xff]
    %1375 = vmatprep.subr.mxu0 %v141
    %1376 = vmatpush1.msra.mxu0 %v140
    %1377 = vmatprep.subr.mxu0 %v137
    %1378 = vmatpush1.msra.mxu0 %v136
    %1379 = vmatprep.subr.mxu0 %v133
    %1380 = vmatpush1.msra.mxu0 %v132
    %1381 = vmatprep.subr.mxu0 %v129
    %1382 = vmatpush1.msra.mxu0 %v128
    %1383 = vmatprep.subr.mxu0 %v125
    %1384 = vmatpush1.msra.mxu0 %v124
    %1385 = vmatprep.subr.mxu0 %v121
    %1386 = vmatpush1.msra.mxu0 %v120
    %1387 = vmatprep.subr.mxu0 %v117
    %1388 = vmatpush1.msra.mxu0 %v116
    %1389 = vmatprep.subr.mxu0 %v113
    %1390 = vmatpush1.msra.mxu0 %v112
    %1391 = vmatprep.subr.mxu0 %v109
    %1392 = vmatpush1.msra.mxu0 %v108
    %1393 = vmatprep.subr.mxu0 %v105
    %1394 = vmatpush1.msra.mxu0 %v104
    %1395 = vmatprep.subr.mxu0 %v101
    %1396 = vmatpush1.msra.mxu0 %v100
    %1397 = vmatprep.subr.mxu0 %v97
    %1398 = vmatpush1.msra.mxu0 %v96
    %1399 = vmatprep.subr.mxu0 %v93
    %1400 = vmatpush1.msra.mxu0 %v92
    %1401 = vmatprep.subr.mxu0 %v89
    %1402 = vmatpush1.msra.mxu0 %v88
    %1403 = vmatprep.subr.mxu0 %v85
    %1404 = vmatpush1.msra.mxu0 %v84
    %1405 = vmatprep.subr.mxu0 %v81
    %1406 = vmatpush1.msra.mxu0 %v80
    %1407 = vmatprep.subr.mxu0 0.0
    %1408 = vmatpush2.msra.mxu0 0.0
    %1409 = vmatprep.subr.mxu0 0.0
    %1410 = vmatpush2.msra.mxu0 0.0
    %1411 = vmatprep.subr.mxu0 0.0
    %1412 = vmatpush2.msra.mxu0 0.0
    %1413 = vmatprep.subr.mxu0 0.0
    %1414 = vmatpush2.msra.mxu0 0.0
    %1415 = vmatprep.subr.mxu0 0.0
    %1416 = vmatpush2.msra.mxu0 0.0
    %1417 = vmatprep.subr.mxu0 0.0
    %1418 = vmatpush2.msra.mxu0 0.0
    %1419 = vmatprep.subr.mxu0 0.0
    %1420 = vmatpush2.msra.mxu0 0.0
    %1421 = vmatprep.subr.mxu0 0.0
    %1422 = vmatpush2.msra.mxu0 0.0
    %1423 = vmatprep.subr.mxu0 0.0
    %1424 = vmatpush2.msra.mxu0 0.0
    %1425 = vmatprep.subr.mxu0 0.0
    %1426 = vmatpush2.msra.mxu0 0.0
    %1427 = vmatprep.subr.mxu0 0.0
    %1428 = vmatpush2.msra.mxu0 0.0
    %1429 = vmatprep.subr.mxu0 0.0
    %1430 = vmatpush2.msra.mxu0 0.0
    %1431 = vmatprep.subr.mxu0 0.0
    %1432 = vmatpush2.msra.mxu0 0.0
    %1433 = vmatprep.subr.mxu0 0.0
    %1434 = vmatpush2.msra.mxu0 0.0
    %1435 = vmatprep.subr.mxu0 0.0
    %1436 = vmatpush2.msra.mxu0 0.0
    %1437 = vmatprep.subr.mxu0 0.0
    %1438 = vmatpush2.msra.mxu0 0.0
    %1439 = vmatprep.mubr.f32.mxu0 0.0
    %1440 = vmatmul.mubr.f32.gmra.mxu0 %v1369
    %v1441 = vpop.f32.mrf.mxu0
    %v1442 = vadd.f32 0.0, %v1441
    %v1443 = vpop.f32.mrf.mxu0
    %v1444 = vadd.f32 0.0, %v1443
    %1445 = vdwg.mxu0
    %1446 = vmatprep.subr.mxu0 %v143
    %1447 = vmatpush1.msra.mxu0 %v142
    %1448 = vmatprep.subr.mxu0 %v139
    %1449 = vmatpush1.msra.mxu0 %v138
    %1450 = vmatprep.subr.mxu0 %v135
    %1451 = vmatpush1.msra.mxu0 %v134
    %1452 = vmatprep.subr.mxu0 %v131
    %1453 = vmatpush1.msra.mxu0 %v130
    %1454 = vmatprep.subr.mxu0 %v127
    %1455 = vmatpush1.msra.mxu0 %v126
    %1456 = vmatprep.subr.mxu0 %v123
    %1457 = vmatpush1.msra.mxu0 %v122
    %1458 = vmatprep.subr.mxu0 %v119
    %1459 = vmatpush1.msra.mxu0 %v118
    %1460 = vmatprep.subr.mxu0 %v115
    %1461 = vmatpush1.msra.mxu0 %v114
    %1462 = vmatprep.subr.mxu0 %v111
    %1463 = vmatpush1.msra.mxu0 %v110
    %1464 = vmatprep.subr.mxu0 %v107
    %1465 = vmatpush1.msra.mxu0 %v106
    %1466 = vmatprep.subr.mxu0 %v103
    %1467 = vmatpush1.msra.mxu0 %v102
    %1468 = vmatprep.subr.mxu0 %v99
    %1469 = vmatpush1.msra.mxu0 %v98
    %1470 = vmatprep.subr.mxu0 %v95
    %1471 = vmatpush1.msra.mxu0 %v94
    %1472 = vmatprep.subr.mxu0 %v91
    %1473 = vmatpush1.msra.mxu0 %v90
    %1474 = vmatprep.subr.mxu0 %v87
    %1475 = vmatpush1.msra.mxu0 %v86
    %1476 = vmatprep.subr.mxu0 %v83
    %1477 = vmatpush1.msra.mxu0 %v82
    %1478 = vmatprep.subr.mxu0 0.0
    %1479 = vmatpush2.msra.mxu0 0.0
    %1480 = vmatprep.subr.mxu0 0.0
    %1481 = vmatpush2.msra.mxu0 0.0
    %1482 = vmatprep.subr.mxu0 0.0
    %1483 = vmatpush2.msra.mxu0 0.0
    %1484 = vmatprep.subr.mxu0 0.0
    %1485 = vmatpush2.msra.mxu0 0.0
    %1486 = vmatprep.subr.mxu0 0.0
    %1487 = vmatpush2.msra.mxu0 0.0
    %1488 = vmatprep.subr.mxu0 0.0
    %1489 = vmatpush2.msra.mxu0 0.0
    %1490 = vmatprep.subr.mxu0 0.0
    %1491 = vmatpush2.msra.mxu0 0.0
    %1492 = vmatprep.subr.mxu0 0.0
    %1493 = vmatpush2.msra.mxu0 0.0
    %1494 = vmatprep.subr.mxu0 0.0
    %1495 = vmatpush2.msra.mxu0 0.0
    %1496 = vmatprep.subr.mxu0 0.0
    %1497 = vmatpush2.msra.mxu0 0.0
    %1498 = vmatprep.subr.mxu0 0.0
    %1499 = vmatpush2.msra.mxu0 0.0
    %1500 = vmatprep.subr.mxu0 0.0
    %1501 = vmatpush2.msra.mxu0 0.0
    %1502 = vmatprep.subr.mxu0 0.0
    %1503 = vmatpush2.msra.mxu0 0.0
    %1504 = vmatprep.subr.mxu0 0.0
    %1505 = vmatpush2.msra.mxu0 0.0
    %1506 = vmatprep.subr.mxu0 0.0
    %1507 = vmatpush2.msra.mxu0 0.0
    %1508 = vmatprep.subr.mxu0 0.0
    %1509 = vmatpush2.msra.mxu0 0.0
    %1510 = vmatprep.mubr.f32.mxu0 0.0
    %1511 = vmatmul.mubr.f32.gmra.mxu0 %v1369
    %v1512 = vpop.f32.mrf.mxu0
    %v1513 = vadd.f32 0.0, %v1512
    %v1514 = vpop.f32.mrf.mxu0
    %v1515 = vadd.f32 0.0, %v1514
    %1516 = vdwg.mxu0
    %v1517 = vadd.f32 %v1371, %v1442
    %v1518 = vadd.f32 %v1372, %v1444
    %v1519 = vadd.f32 %v1373, %v1513
    %v1520 = vadd.f32 %v1374, %v1515
    %v1521 = vxor.u32 %v1517, 2147483648
    %v1522 = vxor.u32 %v1518, 2147483648
    %v1523 = vxor.u32 %v1519, 2147483648
    %v1524 = vmul.f32 %v1521, 1.442695
    %v1525 = vpow.pop %v1524
    %v1526 = vmul.f32 %v1522, 1.442695
    %v1527 = vpow.pop %v1526
    %v1528 = vmul.f32 %v1523, 1.442695
    %v1529 = vpow.pop %v1528
    %v1530 = vadd.f32 %v1525, 1.0
    %v1531 = vadd.f32 %v1527, 1.0
    %v1532 = vadd.f32 %v1529, 1.0
    %v1533 = vrcp.pop %v1530
    %v1534 = vmul.f32 1.0, %v1533
    %v1535 = vrcp.pop %v1531
    %v1536 = vmul.f32 1.0, %v1535
    %v1537 = vrcp.pop %v1532
    %v1538 = vmul.f32 1.0, %v1537
    %v1539 = vtanh.pop %v1520
    %v1540 = vmul.f32 %v1536, %v1367
    %v1541 = vmul.f32 %v1534, %v1539
    %v1542 = vadd.f32 %v1540, %v1541
    %v1543 = vtanh.pop %v1542
    %v1544 = vmul.f32 %v1538, %v1543
    %1545 = vst [vmem:[#allocation10] sm:$0xff] %v1544
    %1546 = vst [vmem:[#allocation11] sm:$0xff] %v1542
    // Predicated region
    $region38: #{tpu_custom_call.1} parent=1 // pred_check
      _
    $region39: #{tpu_custom_call.1} parent=1 // pred_check_branch
      %1548 = sbr.rel (0) target = $region41
    $region40: #{tpu_custom_call.1} parent=1 // pred_region
      %s1550 = ssub.s32 128, 128
      %1551 = vsyncadd [#allocation4], %s1550
      %s1553 = sshll.u32 [#allocation10], 4
      %s1554 = int_to_ptr.vmem [resolvable:$true] %s1553
      %1556 = dma.vmem_to_hbm [thread:$0]  %s1554, 128, %s4, [#allocation4]
    $region41: #{tpu_custom_call.1} parent=1 // pred_fallthru
      _
    // Predicated region
    $region42: #{tpu_custom_call.1} parent=1 // pred_check
      _
    $region43: #{tpu_custom_call.1} parent=1 // pred_check_branch
      %1558 = sbr.rel (0) target = $region45
    $region44: #{tpu_custom_call.1} parent=1 // pred_region
      %s1560 = ssub.s32 128, 128
      %1561 = vsyncadd [#allocation12], %s1560
      %s1563 = sshll.u32 [#allocation11], 4
      %s1564 = int_to_ptr.vmem [resolvable:$true] %s1563
      %1566 = dma.vmem_to_hbm [thread:$0]  %s1564, 128, %s5, [#allocation12]
    $region45: #{tpu_custom_call.1} parent=1 // pred_fallthru
      _
    // Predicated region
    $region46: #{tpu_custom_call.1} parent=1 // pred_check
      _
    $region47: #{tpu_custom_call.1} parent=1 // pred_check_branch
      %1568 = sbr.rel (0) target = $region49
    $region48: #{tpu_custom_call.1} parent=1 // pred_region
      %1569 = dma.done [#allocation4], 128
    $region49: #{tpu_custom_call.1} parent=1 // pred_fallthru
      _
    // Predicated region
    $region50: #{tpu_custom_call.1} parent=1 // pred_check
      _
    $region51: #{tpu_custom_call.1} parent=1 // pred_check_branch
      %1571 = sbr.rel (0) target = $region53
    $region52: #{tpu_custom_call.1} parent=1 // pred_region
      %1572 = dma.done [#allocation12], 128
    $region53: #{tpu_custom_call.1} parent=1 // pred_fallthru
      _
    %1573 = vsyncpa [#allocation3], 1
    %1574 = vsyncpa [#allocation6], 1
    %1575 = vsyncpa [#allocation9], 1
    %1576 = vsyncpa [#allocation4], 1
    %1577 = vsyncpa [#allocation12], 1

</llo_original>
